<compile_context>
chip_gen: v5e
topology: v5e:2x2
jax: 0.10.0
libtpu: 0.0.40
codegen_flags: <defaults>
</compile_context>

<pallas_src>
import functools

import jax
import jax.numpy as jnp
from jax import lax
from jax.experimental import pallas as pl
from jax.experimental.pallas import tpu as pltpu


def _round_up(x, m):
    return (x + m - 1) // m * m


def _pad_to(a, shape):
    return jnp.pad(a, [(0, s - d) for d, s in zip(a.shape, shape)])


def _derive_batch_tile(B, L, F, Hp, Cp, weight_bytes, *, num_cores,
                       vmem_budget_bytes, max_tile=256):
    """Pick the largest batch tile that (a) splits B over num_cores grid tiles
    and (b) fits the explicit VMEM budget (v7x: 64 MiB physical)."""
    itemsize = 4
    per_row = (L * Hp * itemsize          # seq_buf scratch (single-buffered)
               + 2 * L * F * itemsize     # fused feature tile (double-buffered)
               + 2 * Hp * itemsize        # demo-bias tile (double-buffered)
               + 2 * Cp * itemsize)       # output tile (double-buffered)
    headroom = 2 << 20                    # compiler scratch / vreg spill slack
    avail = vmem_budget_bytes - 2 * weight_bytes - headroom
    bt_vmem = max(8, (avail // per_row) // 8 * 8)
    bt_want = _round_up(max(1, -(-B // num_cores)), 8)
    # TODO(synk): if even Bt=8 does not fit (huge L), L itself must be tiled.
    return int(max(8, min(bt_want, bt_vmem, max_tile)))


# ----------------------------------------------------------------------------
# Pallas kernel: fused encoder / hoisted input projections + stacked RNN
# ----------------------------------------------------------------------------
def _rnn_model_kernel(n_layers, *refs):
    f32 = jnp.float32
    x_feat_ref, demo_bias_ref = refs[0:2]
    w0_ref, w_hh0_ref = refs[2:4]
    n_extra = n_layers - 1
    layer_refs = refs[4:4 + 3 * n_extra]          # (w_ih, w_hh, b) per extra layer
    w_fc_ref, b_fc_ref, out_ref, seq_buf = refs[4 + 3 * n_extra:]

    L, Bt, Hp = seq_buf.shape
    LB = L * Bt

    # ---- layer-0 pre-activation: ONE fused matmul (cate+nume features vs the
    # encoder-folded (F, Hp) weight) + ONE add of the demo/bias row term.
    pre0 = jnp.dot(x_feat_ref[...].reshape(LB, -1), w0_ref[...],
                   preferred_element_type=f32)
    seq_buf[...] = pre0.reshape(L, Bt, Hp) + demo_bias_ref[...][None, :, :]

    # bounded unroll: full only for short sequences, 8 otherwise (keeps LLO
    # scheduling visibility without instruction-memory blowup at large L).
    unroll = L if L <= 32 else 8

    # ---- serial recurrence: only tanh(pre[t] + h @ w_hh) on the h-dependency.
    # w_hh is read once per layer (loop-invariant RHS -> MXU latch hoistable).
    def run_layer(w_hh):
        def step(t, h):
            h_new = jnp.tanh(seq_buf[t]
                             + jnp.dot(h, w_hh, preferred_element_type=f32))
            seq_buf[t] = h_new
            return h_new
        return lax.fori_loop(0, L, step, jnp.zeros((Bt, Hp), f32),
                             unroll=unroll)

    h_last = run_layer(w_hh0_ref[...])

    for l in range(n_extra):
        w_ih_ref, w_hh_ref, b_ref = layer_refs[3 * l:3 * l + 3]
        # hoisted, time-batched input projection for layer l+1 (one big matmul)
        pre = jnp.dot(seq_buf[...].reshape(LB, Hp), w_ih_ref[...],
                      preferred_element_type=f32)
        # note: padded batch rows pick up the bias here -> h_pad != 0; harmless,
        # the wrapper slices the output back to [:B].
        seq_buf[...] = pre.reshape(L, Bt, Hp) + b_ref[...]
        h_last = run_layer(w_hh_ref[...])

    # fc head on last time step (rnn_dropout / fc_dropout are identity in eval).
    out_ref[...] = (jnp.dot(h_last, w_fc_ref[...], preferred_element_type=f32)
                    + b_fc_ref[...])


# ----------------------------------------------------------------------------
# Wrapper: layout/pad glue + weight-space folding, compute stays in the kernel
# ----------------------------------------------------------------------------
def rnn_model_forward(params, cate, nume, demo, *, num_cores=1,
                      vmem_budget_bytes=40 << 20):
    """cate: (B, n_cate, L) int32, nume: (B, 10, L) f32, demo: (B, 4) f32.

    num_cores: set to 2 on v7x so the batch grid splits across both
    TensorCores; 1 on v5e/v6e (single TC per chip).
    """
    f32 = jnp.float32
    n_layers = len(params["rnn"])
    B, _, L = nume.shape
    c_emb = params["cate_emb"].shape[-1]
    H = params["rnn"][0][1].shape[0]
    c_out = params["fc_w"].shape[0]

    Hp = _round_up(H, 128)           # lane-dense hidden dim
    Cp = _round_up(c_out, 128)       # lane-dense output
    F = c_emb + 10                   # fused cate+nume feature width

    # TODO(synk): CateEncoder source not provided; modeled as per-feature
    # embedding lookup summed over categorical features -> (B, L, c_emb).
    emb = params["cate_emb"]
    x_cate = jnp.zeros((B, L, c_emb), f32)
    for i in range(emb.shape[0]):
        x_cate = x_cate + emb[i][cate[:, i, :]]                # gather is glue

    # ---- weight-space folding (layer 0): compose nume Conv1d(k=1) and the
    # cate path with w_ih0 into a single (F, Hp) weight; fold the demo Linear,
    # b_ih0 and b_hh0 into a per-batch-row bias.
    w_ih0, w_hh0, b_ih0, b_hh0 = params["rnn"][0]
    w_ih0_t = w_ih0.T                                          # (c_emb, H)
    w0 = jnp.concatenate(
        [w_ih0_t, params["nume_w"][:, :, 0].T @ w_ih0_t], axis=0)   # (F, H)
    w0_p = _pad_to(w0, (F, Hp))
    demo_bias = demo.astype(f32) @ (params["demo_w"].T @ w_ih0_t) + b_ih0 + b_hh0
    w_hh0_t = _pad_to(w_hh0.T, (Hp, Hp))

    layer_flat = []
    for (w_ih, w_hh, b_ih, b_hh) in params["rnn"][1:]:
        layer_flat += [_pad_to(w_ih.T, (Hp, Hp)),
                       _pad_to(w_hh.T, (Hp, Hp)),
                       _pad_to((b_ih + b_hh)[None, :], (1, Hp))]

    w_fc_t = _pad_to(params["fc_w"].T, (Hp, Cp))
    b_fc_p = _pad_to(params["fc_b"][None, :], (1, Cp))

    weight_arrays = [w0_p, w_hh0_t, *layer_flat, w_fc_t, b_fc_p]
    weight_bytes = sum(int(a.size) * 4 for a in weight_arrays)

    # ---- batch tiling: largest Bt that splits B over num_cores tiles and
    # fits the VMEM budget (seq_buf + double-buffered tiles/weights).
    Bt = _derive_batch_tile(B, L, F, Hp, Cp, weight_bytes,
                            num_cores=num_cores,
                            vmem_budget_bytes=vmem_budget_bytes)
    Bp = _round_up(max(B, Bt), Bt)
    nb = Bp // Bt

    # layout glue: time-major, fused cate+nume features, zero-pad batch.
    # padded rows are all-zero (features and bias) -> their hidden state stays 0.
    x_feat = jnp.concatenate(
        [jnp.transpose(x_cate, (1, 0, 2)),
         jnp.transpose(nume.astype(f32), (2, 0, 1))], axis=-1)      # (L, B, F)
    x_feat_p = _pad_to(x_feat, (L, Bp, F))
    demo_bias_p = _pad_to(demo_bias, (Bp, Hp))

    inputs = [x_feat_p, demo_bias_p, *weight_arrays]

    in_specs = [
        pl.BlockSpec((L, Bt, F), lambda i: (0, i, 0)),
        pl.BlockSpec((Bt, Hp), lambda i: (i, 0)),
    ] + [pl.BlockSpec(a.shape, lambda i, nd=a.ndim: (0,) * nd)
         for a in weight_arrays]                     # weights: constant block

    kernel = functools.partial(_rnn_model_kernel, n_layers)
    out_p = pl.pallas_call(
        kernel,
        out_shape=jax.ShapeDtypeStruct((Bp, Cp), f32),
        grid=(nb,),
        in_specs=in_specs,
        out_specs=pl.BlockSpec((Bt, Cp), lambda i: (i, 0)),
        scratch_shapes=[pltpu.VMEM((L, Bt, Hp), f32)],
        compiler_params=pltpu.CompilerParams(
            # batch tiles are independent -> megacore-parallel (v7x 2 TCs)
            dimension_semantics=("parallel",),
            # explicit scoped-VMEM limit: <= v7x's 64 MiB physical, raises the
            # 32 MiB default so the derived Bt fits on every generation.
            vmem_limit_bytes=48 * 1024 * 1024,
        ),
    )(*inputs)
    # TODO(synk): bidirectional=True (reverse-direction pass) not implemented.
    return out_p[:B, :c_out]


# ----------------------------------------------------------------------------
# Pure-JAX reference (correctness check)
# ----------------------------------------------------------------------------
def rnn_model_reference(params, cate, nume, demo):
    emb = params["cate_emb"]
    B, _, L = nume.shape
    x_cate = jnp.zeros((B, L, emb.shape[-1]), jnp.float32)
    for i in range(emb.shape[0]):
        x_cate = x_cate + emb[i][cate[:, i, :]]
    x_nume = jnp.einsum("bfl,cf->blc", nume, params["nume_w"][:, :, 0])
    x_demo = demo @ params["demo_w"].T
    seq = x_cate + x_nume + x_demo[:, None, :]                 # (B, L, c_emb)

    for (w_ih, w_hh, b_ih, b_hh) in params["rnn"]:
        H = w_hh.shape[0]
        hs = jnp.zeros((B, H), jnp.float32)
        outs = []
        for t in range(L):
            hs = jnp.tanh(seq[:, t, :] @ w_ih.T + b_ih + hs @ w_hh.T + b_hh)
            outs.append(hs)
        seq = jnp.stack(outs, axis=1)
    return seq[:, -1, :] @ params["fc_w"].T + params["fc_b"]


# ----------------------------------------------------------------------------
# Deterministic parameter init + demo run
# ----------------------------------------------------------------------------
def init_params(key, *, n_cate, vocab, c_emb, hidden, n_layers, c_out):
    keys = jax.random.split(key, 8 + 4 * n_layers)
    ki = iter(keys)
    params = {}
    params["cate_emb"] = 0.1 * jax.random.normal(next(ki), (n_cate, vocab, c_emb), jnp.float32)
    # Conv1d kaiming_normal_(fan_out, relu): std = sqrt(2 / (c_emb * 1))
    params["nume_w"] = (jnp.sqrt(2.0 / c_emb)
                        * jax.random.normal(next(ki), (c_emb, 10, 1), jnp.float32))
    params["demo_w"] = (1.0 / jnp.sqrt(4.0)) * jax.random.uniform(
        next(ki), (c_emb, 4), jnp.float32, -1.0, 1.0)
    layers = []
    bound = 1.0 / jnp.sqrt(float(hidden))
    for l in range(n_layers):
        in_dim = c_emb if l == 0 else hidden
        w_ih = bound * jax.random.uniform(next(ki), (hidden, in_dim), jnp.float32, -1.0, 1.0)
        w_hh = bound * jax.random.uniform(next(ki), (hidden, hidden), jnp.float32, -1.0, 1.0)
        b_ih = bound * jax.random.uniform(next(ki), (hidden,), jnp.float32, -1.0, 1.0)
        b_hh = bound * jax.random.uniform(next(ki), (hidden,), jnp.float32, -1.0, 1.0)
        layers.append((w_ih, w_hh, b_ih, b_hh))
    params["rnn"] = layers
    params["fc_w"] = bound * jax.random.uniform(next(ki), (c_out, hidden), jnp.float32, -1.0, 1.0)
    params["fc_b"] = bound * jax.random.uniform(next(ki), (c_out,), jnp.float32, -1.0, 1.0)
    return params


if __name__ == "__main__":
    # Small config: c_emb=8, c_out=4, hidden=32, n_layers=2, bias=True,
    # rnn_dropout=0, bidirectional=False, fc_dropout=0 (eval mode).
    B, L = 2, 8
    n_cate, vocab = 3, 11
    c_emb, hidden, n_layers, c_out = 8, 32, 2, 4

    key = jax.random.PRNGKey(0)
    kp, kc, kn, kd = jax.random.split(key, 4)
    params = init_params(kp, n_cate=n_cate, vocab=vocab, c_emb=c_emb,
                         hidden=hidden, n_layers=n_layers, c_out=c_out)

    cate = jax.random.randint(kc, (B, n_cate, L), 0, vocab, jnp.int32)
    nume = jax.random.normal(kn, (B, 10, L), jnp.float32)
    demo = jax.random.normal(kd, (B, 4), jnp.float32)

    out = rnn_model_forward(params, cate, nume, demo)
    out = jax.block_until_ready(out)

    ref = rnn_model_reference(params, cate, nume, demo)
    assert out.shape == (B, c_out)
    assert bool(jnp.all(jnp.isfinite(out)))
    assert bool(jnp.allclose(out, ref, atol=2e-2, rtol=2e-2)), (out, ref)

    print("KERNEL_OK")
</pallas_src>

<mosaic_0001>
module attributes {stable_mosaic.version = 11 : i64} {
  func.func @_rnn_model_kernel(%arg0: i32, %arg1: memref<8x8x18xf32, #tpu.memory_space<vmem>>, %arg2: memref<8x128xf32, #tpu.memory_space<vmem>>, %arg3: memref<18x128xf32, #tpu.memory_space<vmem>>, %arg4: memref<128x128xf32, #tpu.memory_space<vmem>>, %arg5: memref<128x128xf32, #tpu.memory_space<vmem>>, %arg6: memref<128x128xf32, #tpu.memory_space<vmem>>, %arg7: memref<1x128xf32, #tpu.memory_space<vmem>>, %arg8: memref<128x128xf32, #tpu.memory_space<vmem>>, %arg9: memref<1x128xf32, #tpu.memory_space<vmem>>, %arg10: memref<8x128xf32, #tpu.memory_space<vmem>>, %arg11: memref<8x8x128xf32, #tpu.memory_space<vmem>>) attributes {dimension_semantics = [#tpu.dimension_semantics<parallel>], iteration_bounds = array<i64: 1>, scalar_prefetch = 0 : i64, scratch_operands = 1 : i64, tpu.core_type = #tpu.core_type<tc>, window_params = [{transform_indices = @transform_0, window_bounds = array<i64: 8, 8, 18>}, {transform_indices = @transform_1, window_bounds = array<i64: 8, 128>}, {pipeline_mode = #tpu.pipeline_mode<synchronous>, transform_indices = @transform_2, window_bounds = array<i64: 18, 128>}, {pipeline_mode = #tpu.pipeline_mode<synchronous>, transform_indices = @transform_3, window_bounds = array<i64: 128, 128>}, {pipeline_mode = #tpu.pipeline_mode<synchronous>, transform_indices = @transform_4, window_bounds = array<i64: 128, 128>}, {pipeline_mode = #tpu.pipeline_mode<synchronous>, transform_indices = @transform_5, window_bounds = array<i64: 128, 128>}, {pipeline_mode = #tpu.pipeline_mode<synchronous>, transform_indices = @transform_6, window_bounds = array<i64: 1, 128>}, {pipeline_mode = #tpu.pipeline_mode<synchronous>, transform_indices = @transform_7, window_bounds = array<i64: 128, 128>}, {pipeline_mode = #tpu.pipeline_mode<synchronous>, transform_indices = @transform_8, window_bounds = array<i64: 1, 128>}, {transform_indices = @transform_9, window_bounds = array<i64: 8, 128>}]} {
    %c0 = arith.constant 0 : index
    %c0_0 = arith.constant 0 : index
    %c0_1 = arith.constant 0 : index
    %0 = vector.load %arg1[%c0, %c0_0, %c0_1] : memref<8x8x18xf32, #tpu.memory_space<vmem>>, vector<8x8x18xf32>
    %1 = vector.shape_cast %0 : vector<8x8x18xf32> to vector<64x18xf32>
    %c0_2 = arith.constant 0 : index
    %c0_3 = arith.constant 0 : index
    %2 = vector.load %arg3[%c0_2, %c0_3] : memref<18x128xf32, #tpu.memory_space<vmem>>, vector<18x128xf32>
    %cst = arith.constant dense<0.000000e+00> : vector<64x128xf32>
    %3 = tpu.matmul %1, %2, %cst {dimension_numbers = #tpu.dot_dimension_numbers<[1], [0], [0], [1], [0, 0, 1, 1], [], []>} : vector<64x18xf32>, vector<18x128xf32>, vector<64x128xf32> -> vector<64x128xf32>
    %4 = vector.shape_cast %3 : vector<64x128xf32> to vector<8x8x128xf32>
    %c0_4 = arith.constant 0 : index
    %c0_5 = arith.constant 0 : index
    %5 = vector.load %arg2[%c0_4, %c0_5] : memref<8x128xf32, #tpu.memory_space<vmem>>, vector<8x128xf32>
    %6 = vector.shape_cast %5 : vector<8x128xf32> to vector<1x8x128xf32>
    %7 = vector.broadcast %6 : vector<1x8x128xf32> to vector<8x8x128xf32>
    %8 = arith.addf %4, %7 : vector<8x8x128xf32>
    %c0_6 = arith.constant 0 : index
    %c0_7 = arith.constant 0 : index
    %c0_8 = arith.constant 0 : index
    %9 = vector.load %arg11[%c0_6, %c0_7, %c0_8] : memref<8x8x128xf32, #tpu.memory_space<vmem>>, vector<8x8x128xf32>
    tpu.vector_store %arg11[%c0_6, %c0_7, %c0_8], %8 {strides = array<i32>} : memref<8x8x128xf32, #tpu.memory_space<vmem>>, vector<8x8x128xf32>,
    %c0_9 = arith.constant 0 : index
    %c0_10 = arith.constant 0 : index
    %10 = vector.load %arg4[%c0_9, %c0_10] : memref<128x128xf32, #tpu.memory_space<vmem>>, vector<128x128xf32>
    %cst_11 = arith.constant 0.000000e+00 : f32
    %11 = vector.broadcast %cst_11 : f32 to vector<8x128xf32>
    %c0_i32 = arith.constant 0 : i32
    %12 = arith.index_cast %c0_i32 : i32 to index
    %c0_12 = arith.constant 0 : index
    %c0_13 = arith.constant 0 : index
    %13 = vector.load %arg11[%12, %c0_12, %c0_13] : memref<8x8x128xf32, #tpu.memory_space<vmem>>, vector<1x8x128xf32>
    %14 = vector.shape_cast %13 : vector<1x8x128xf32> to vector<8x128xf32>
    %cst_14 = arith.constant dense<0.000000e+00> : vector<8x128xf32>
    %15 = tpu.matmul %11, %10, %cst_14 {dimension_numbers = #tpu.dot_dimension_numbers<[1], [0], [0], [1], [0, 0, 1, 1], [], []>} : vector<8x128xf32>, vector<128x128xf32>, vector<8x128xf32> -> vector<8x128xf32>
    %16 = arith.addf %14, %15 : vector<8x128xf32>
    %17 = math.tanh %16 : vector<8x128xf32>
    %18 = arith.index_cast %c0_i32 : i32 to index
    %c0_15 = arith.constant 0 : index
    %c0_16 = arith.constant 0 : index
    %19 = vector.load %arg11[%18, %c0_15, %c0_16] : memref<8x8x128xf32, #tpu.memory_space<vmem>>, vector<1x8x128xf32>
    %20 = vector.shape_cast %19 : vector<1x8x128xf32> to vector<8x128xf32>
    %21 = vector.shape_cast %17 : vector<8x128xf32> to vector<1x8x128xf32>
    tpu.vector_store %arg11[%18, %c0_15, %c0_16], %21 {strides = array<i32>} : memref<8x8x128xf32, #tpu.memory_space<vmem>>, vector<1x8x128xf32>,
    %c1_i32 = arith.constant 1 : i32
    %22 = arith.index_cast %c1_i32 : i32 to index
    %c0_17 = arith.constant 0 : index
    %c0_18 = arith.constant 0 : index
    %23 = vector.load %arg11[%22, %c0_17, %c0_18] : memref<8x8x128xf32, #tpu.memory_space<vmem>>, vector<1x8x128xf32>
    %24 = vector.shape_cast %23 : vector<1x8x128xf32> to vector<8x128xf32>
    %cst_19 = arith.constant dense<0.000000e+00> : vector<8x128xf32>
    %25 = tpu.matmul %17, %10, %cst_19 {dimension_numbers = #tpu.dot_dimension_numbers<[1], [0], [0], [1], [0, 0, 1, 1], [], []>} : vector<8x128xf32>, vector<128x128xf32>, vector<8x128xf32> -> vector<8x128xf32>
    %26 = arith.addf %24, %25 : vector<8x128xf32>
    %27 = math.tanh %26 : vector<8x128xf32>
    %28 = arith.index_cast %c1_i32 : i32 to index
    %c0_20 = arith.constant 0 : index
    %c0_21 = arith.constant 0 : index
    %29 = vector.load %arg11[%28, %c0_20, %c0_21] : memref<8x8x128xf32, #tpu.memory_space<vmem>>, vector<1x8x128xf32>
    %30 = vector.shape_cast %29 : vector<1x8x128xf32> to vector<8x128xf32>
    %31 = vector.shape_cast %27 : vector<8x128xf32> to vector<1x8x128xf32>
    tpu.vector_store %arg11[%28, %c0_20, %c0_21], %31 {strides = array<i32>} : memref<8x8x128xf32, #tpu.memory_space<vmem>>, vector<1x8x128xf32>,
    %c2_i32 = arith.constant 2 : i32
    %32 = arith.index_cast %c2_i32 : i32 to index
    %c0_22 = arith.constant 0 : index
    %c0_23 = arith.constant 0 : index
    %33 = vector.load %arg11[%32, %c0_22, %c0_23] : memref<8x8x128xf32, #tpu.memory_space<vmem>>, vector<1x8x128xf32>
    %34 = vector.shape_cast %33 : vector<1x8x128xf32> to vector<8x128xf32>
    %cst_24 = arith.constant dense<0.000000e+00> : vector<8x128xf32>
    %35 = tpu.matmul %27, %10, %cst_24 {dimension_numbers = #tpu.dot_dimension_numbers<[1], [0], [0], [1], [0, 0, 1, 1], [], []>} : vector<8x128xf32>, vector<128x128xf32>, vector<8x128xf32> -> vector<8x128xf32>
    %36 = arith.addf %34, %35 : vector<8x128xf32>
    %37 = math.tanh %36 : vector<8x128xf32>
    %38 = arith.index_cast %c2_i32 : i32 to index
    %c0_25 = arith.constant 0 : index
    %c0_26 = arith.constant 0 : index
    %39 = vector.load %arg11[%38, %c0_25, %c0_26] : memref<8x8x128xf32, #tpu.memory_space<vmem>>, vector<1x8x128xf32>
    %40 = vector.shape_cast %39 : vector<1x8x128xf32> to vector<8x128xf32>
    %41 = vector.shape_cast %37 : vector<8x128xf32> to vector<1x8x128xf32>
    tpu.vector_store %arg11[%38, %c0_25, %c0_26], %41 {strides = array<i32>} : memref<8x8x128xf32, #tpu.memory_space<vmem>>, vector<1x8x128xf32>,
    %c3_i32 = arith.constant 3 : i32
    %42 = arith.index_cast %c3_i32 : i32 to index
    %c0_27 = arith.constant 0 : index
    %c0_28 = arith.constant 0 : index
    %43 = vector.load %arg11[%42, %c0_27, %c0_28] : memref<8x8x128xf32, #tpu.memory_space<vmem>>, vector<1x8x128xf32>
    %44 = vector.shape_cast %43 : vector<1x8x128xf32> to vector<8x128xf32>
    %cst_29 = arith.constant dense<0.000000e+00> : vector<8x128xf32>
    %45 = tpu.matmul %37, %10, %cst_29 {dimension_numbers = #tpu.dot_dimension_numbers<[1], [0], [0], [1], [0, 0, 1, 1], [], []>} : vector<8x128xf32>, vector<128x128xf32>, vector<8x128xf32> -> vector<8x128xf32>
    %46 = arith.addf %44, %45 : vector<8x128xf32>
    %47 = math.tanh %46 : vector<8x128xf32>
    %48 = arith.index_cast %c3_i32 : i32 to index
    %c0_30 = arith.constant 0 : index
    %c0_31 = arith.constant 0 : index
    %49 = vector.load %arg11[%48, %c0_30, %c0_31] : memref<8x8x128xf32, #tpu.memory_space<vmem>>, vector<1x8x128xf32>
    %50 = vector.shape_cast %49 : vector<1x8x128xf32> to vector<8x128xf32>
    %51 = vector.shape_cast %47 : vector<8x128xf32> to vector<1x8x128xf32>
    tpu.vector_store %arg11[%48, %c0_30, %c0_31], %51 {strides = array<i32>} : memref<8x8x128xf32, #tpu.memory_space<vmem>>, vector<1x8x128xf32>,
    %c4_i32 = arith.constant 4 : i32
    %52 = arith.index_cast %c4_i32 : i32 to index
    %c0_32 = arith.constant 0 : index
    %c0_33 = arith.constant 0 : index
    %53 = vector.load %arg11[%52, %c0_32, %c0_33] : memref<8x8x128xf32, #tpu.memory_space<vmem>>, vector<1x8x128xf32>
    %54 = vector.shape_cast %53 : vector<1x8x128xf32> to vector<8x128xf32>
    %cst_34 = arith.constant dense<0.000000e+00> : vector<8x128xf32>
    %55 = tpu.matmul %47, %10, %cst_34 {dimension_numbers = #tpu.dot_dimension_numbers<[1], [0], [0], [1], [0, 0, 1, 1], [], []>} : vector<8x128xf32>, vector<128x128xf32>, vector<8x128xf32> -> vector<8x128xf32>
    %56 = arith.addf %54, %55 : vector<8x128xf32>
    %57 = math.tanh %56 : vector<8x128xf32>
    %58 = arith.index_cast %c4_i32 : i32 to index
    %c0_35 = arith.constant 0 : index
    %c0_36 = arith.constant 0 : index
    %59 = vector.load %arg11[%58, %c0_35, %c0_36] : memref<8x8x128xf32, #tpu.memory_space<vmem>>, vector<1x8x128xf32>
    %60 = vector.shape_cast %59 : vector<1x8x128xf32> to vector<8x128xf32>
    %61 = vector.shape_cast %57 : vector<8x128xf32> to vector<1x8x128xf32>
    tpu.vector_store %arg11[%58, %c0_35, %c0_36], %61 {strides = array<i32>} : memref<8x8x128xf32, #tpu.memory_space<vmem>>, vector<1x8x128xf32>,
    %c5_i32 = arith.constant 5 : i32
    %62 = arith.index_cast %c5_i32 : i32 to index
    %c0_37 = arith.constant 0 : index
    %c0_38 = arith.constant 0 : index
    %63 = vector.load %arg11[%62, %c0_37, %c0_38] : memref<8x8x128xf32, #tpu.memory_space<vmem>>, vector<1x8x128xf32>
    %64 = vector.shape_cast %63 : vector<1x8x128xf32> to vector<8x128xf32>
    %cst_39 = arith.constant dense<0.000000e+00> : vector<8x128xf32>
    %65 = tpu.matmul %57, %10, %cst_39 {dimension_numbers = #tpu.dot_dimension_numbers<[1], [0], [0], [1], [0, 0, 1, 1], [], []>} : vector<8x128xf32>, vector<128x128xf32>, vector<8x128xf32> -> vector<8x128xf32>
    %66 = arith.addf %64, %65 : vector<8x128xf32>
    %67 = math.tanh %66 : vector<8x128xf32>
    %68 = arith.index_cast %c5_i32 : i32 to index
    %c0_40 = arith.constant 0 : index
    %c0_41 = arith.constant 0 : index
    %69 = vector.load %arg11[%68, %c0_40, %c0_41] : memref<8x8x128xf32, #tpu.memory_space<vmem>>, vector<1x8x128xf32>
    %70 = vector.shape_cast %69 : vector<1x8x128xf32> to vector<8x128xf32>
    %71 = vector.shape_cast %67 : vector<8x128xf32> to vector<1x8x128xf32>
    tpu.vector_store %arg11[%68, %c0_40, %c0_41], %71 {strides = array<i32>} : memref<8x8x128xf32, #tpu.memory_space<vmem>>, vector<1x8x128xf32>,
    %c6_i32 = arith.constant 6 : i32
    %72 = arith.index_cast %c6_i32 : i32 to index
    %c0_42 = arith.constant 0 : index
    %c0_43 = arith.constant 0 : index
    %73 = vector.load %arg11[%72, %c0_42, %c0_43] : memref<8x8x128xf32, #tpu.memory_space<vmem>>, vector<1x8x128xf32>
    %74 = vector.shape_cast %73 : vector<1x8x128xf32> to vector<8x128xf32>
    %cst_44 = arith.constant dense<0.000000e+00> : vector<8x128xf32>
    %75 = tpu.matmul %67, %10, %cst_44 {dimension_numbers = #tpu.dot_dimension_numbers<[1], [0], [0], [1], [0, 0, 1, 1], [], []>} : vector<8x128xf32>, vector<128x128xf32>, vector<8x128xf32> -> vector<8x128xf32>
    %76 = arith.addf %74, %75 : vector<8x128xf32>
    %77 = math.tanh %76 : vector<8x128xf32>
    %78 = arith.index_cast %c6_i32 : i32 to index
    %c0_45 = arith.constant 0 : index
    %c0_46 = arith.constant 0 : index
    %79 = vector.load %arg11[%78, %c0_45, %c0_46] : memref<8x8x128xf32, #tpu.memory_space<vmem>>, vector<1x8x128xf32>
    %80 = vector.shape_cast %79 : vector<1x8x128xf32> to vector<8x128xf32>
    %81 = vector.shape_cast %77 : vector<8x128xf32> to vector<1x8x128xf32>
    tpu.vector_store %arg11[%78, %c0_45, %c0_46], %81 {strides = array<i32>} : memref<8x8x128xf32, #tpu.memory_space<vmem>>, vector<1x8x128xf32>,
    %c7_i32 = arith.constant 7 : i32
    %82 = arith.index_cast %c7_i32 : i32 to index
    %c0_47 = arith.constant 0 : index
    %c0_48 = arith.constant 0 : index
    %83 = vector.load %arg11[%82, %c0_47, %c0_48] : memref<8x8x128xf32, #tpu.memory_space<vmem>>, vector<1x8x128xf32>
    %84 = vector.shape_cast %83 : vector<1x8x128xf32> to vector<8x128xf32>
    %cst_49 = arith.constant dense<0.000000e+00> : vector<8x128xf32>
    %85 = tpu.matmul %77, %10, %cst_49 {dimension_numbers = #tpu.dot_dimension_numbers<[1], [0], [0], [1], [0, 0, 1, 1], [], []>} : vector<8x128xf32>, vector<128x128xf32>, vector<8x128xf32> -> vector<8x128xf32>
    %86 = arith.addf %84, %85 : vector<8x128xf32>
    %87 = math.tanh %86 : vector<8x128xf32>
    %88 = arith.index_cast %c7_i32 : i32 to index
    %c0_50 = arith.constant 0 : index
    %c0_51 = arith.constant 0 : index
    %89 = vector.load %arg11[%88, %c0_50, %c0_51] : memref<8x8x128xf32, #tpu.memory_space<vmem>>, vector<1x8x128xf32>
    %90 = vector.shape_cast %89 : vector<1x8x128xf32> to vector<8x128xf32>
    %91 = vector.shape_cast %87 : vector<8x128xf32> to vector<1x8x128xf32>
    tpu.vector_store %arg11[%88, %c0_50, %c0_51], %91 {strides = array<i32>} : memref<8x8x128xf32, #tpu.memory_space<vmem>>, vector<1x8x128xf32>,
    %c8_i32 = arith.constant 8 : i32
    %c0_52 = arith.constant 0 : index
    %c0_53 = arith.constant 0 : index
    %c0_54 = arith.constant 0 : index
    %92 = vector.load %arg11[%c0_52, %c0_53, %c0_54] : memref<8x8x128xf32, #tpu.memory_space<vmem>>, vector<8x8x128xf32>
    %93 = vector.shape_cast %92 : vector<8x8x128xf32> to vector<64x128xf32>
    %c0_55 = arith.constant 0 : index
    %c0_56 = arith.constant 0 : index
    %94 = vector.load %arg5[%c0_55, %c0_56] : memref<128x128xf32, #tpu.memory_space<vmem>>, vector<128x128xf32>
    %cst_57 = arith.constant dense<0.000000e+00> : vector<64x128xf32>
    %95 = tpu.matmul %93, %94, %cst_57 {dimension_numbers = #tpu.dot_dimension_numbers<[1], [0], [0], [1], [0, 0, 1, 1], [], []>} : vector<64x128xf32>, vector<128x128xf32>, vector<64x128xf32> -> vector<64x128xf32>
    %96 = vector.shape_cast %95 : vector<64x128xf32> to vector<8x8x128xf32>
    %c0_58 = arith.constant 0 : index
    %c0_59 = arith.constant 0 : index
    %97 = vector.load %arg7[%c0_58, %c0_59] : memref<1x128xf32, #tpu.memory_space<vmem>>, vector<1x128xf32>
    %98 = vector.shape_cast %97 : vector<1x128xf32> to vector<1x1x128xf32>
    %99 = vector.broadcast %98 : vector<1x1x128xf32> to vector<8x8x128xf32>
    %100 = arith.addf %96, %99 : vector<8x8x128xf32>
    %c0_60 = arith.constant 0 : index
    %c0_61 = arith.constant 0 : index
    %c0_62 = arith.constant 0 : index
    %101 = vector.load %arg11[%c0_60, %c0_61, %c0_62] : memref<8x8x128xf32, #tpu.memory_space<vmem>>, vector<8x8x128xf32>
    tpu.vector_store %arg11[%c0_60, %c0_61, %c0_62], %100 {strides = array<i32>} : memref<8x8x128xf32, #tpu.memory_space<vmem>>, vector<8x8x128xf32>,
    %c0_63 = arith.constant 0 : index
    %c0_64 = arith.constant 0 : index
    %102 = vector.load %arg6[%c0_63, %c0_64] : memref<128x128xf32, #tpu.memory_space<vmem>>, vector<128x128xf32>
    %cst_65 = arith.constant 0.000000e+00 : f32
    %103 = vector.broadcast %cst_65 : f32 to vector<8x128xf32>
    %c0_i32_66 = arith.constant 0 : i32
    %104 = arith.index_cast %c0_i32_66 : i32 to index
    %c0_67 = arith.constant 0 : index
    %c0_68 = arith.constant 0 : index
    %105 = vector.load %arg11[%104, %c0_67, %c0_68] : memref<8x8x128xf32, #tpu.memory_space<vmem>>, vector<1x8x128xf32>
    %106 = vector.shape_cast %105 : vector<1x8x128xf32> to vector<8x128xf32>
    %cst_69 = arith.constant dense<0.000000e+00> : vector<8x128xf32>
    %107 = tpu.matmul %103, %102, %cst_69 {dimension_numbers = #tpu.dot_dimension_numbers<[1], [0], [0], [1], [0, 0, 1, 1], [], []>} : vector<8x128xf32>, vector<128x128xf32>, vector<8x128xf32> -> vector<8x128xf32>
    %108 = arith.addf %106, %107 : vector<8x128xf32>
    %109 = math.tanh %108 : vector<8x128xf32>
    %110 = arith.index_cast %c0_i32_66 : i32 to index
    %c0_70 = arith.constant 0 : index
    %c0_71 = arith.constant 0 : index
    %111 = vector.load %arg11[%110, %c0_70, %c0_71] : memref<8x8x128xf32, #tpu.memory_space<vmem>>, vector<1x8x128xf32>
    %112 = vector.shape_cast %111 : vector<1x8x128xf32> to vector<8x128xf32>
    %113 = vector.shape_cast %109 : vector<8x128xf32> to vector<1x8x128xf32>
    tpu.vector_store %arg11[%110, %c0_70, %c0_71], %113 {strides = array<i32>} : memref<8x8x128xf32, #tpu.memory_space<vmem>>, vector<1x8x128xf32>,
    %c1_i32_72 = arith.constant 1 : i32
    %114 = arith.index_cast %c1_i32_72 : i32 to index
    %c0_73 = arith.constant 0 : index
    %c0_74 = arith.constant 0 : index
    %115 = vector.load %arg11[%114, %c0_73, %c0_74] : memref<8x8x128xf32, #tpu.memory_space<vmem>>, vector<1x8x128xf32>
    %116 = vector.shape_cast %115 : vector<1x8x128xf32> to vector<8x128xf32>
    %cst_75 = arith.constant dense<0.000000e+00> : vector<8x128xf32>
    %117 = tpu.matmul %109, %102, %cst_75 {dimension_numbers = #tpu.dot_dimension_numbers<[1], [0], [0], [1], [0, 0, 1, 1], [], []>} : vector<8x128xf32>, vector<128x128xf32>, vector<8x128xf32> -> vector<8x128xf32>
    %118 = arith.addf %116, %117 : vector<8x128xf32>
    %119 = math.tanh %118 : vector<8x128xf32>
    %120 = arith.index_cast %c1_i32_72 : i32 to index
    %c0_76 = arith.constant 0 : index
    %c0_77 = arith.constant 0 : index
    %121 = vector.load %arg11[%120, %c0_76, %c0_77] : memref<8x8x128xf32, #tpu.memory_space<vmem>>, vector<1x8x128xf32>
    %122 = vector.shape_cast %121 : vector<1x8x128xf32> to vector<8x128xf32>
    %123 = vector.shape_cast %119 : vector<8x128xf32> to vector<1x8x128xf32>
    tpu.vector_store %arg11[%120, %c0_76, %c0_77], %123 {strides = array<i32>} : memref<8x8x128xf32, #tpu.memory_space<vmem>>, vector<1x8x128xf32>,
    %c2_i32_78 = arith.constant 2 : i32
    %124 = arith.index_cast %c2_i32_78 : i32 to index
    %c0_79 = arith.constant 0 : index
    %c0_80 = arith.constant 0 : index
    %125 = vector.load %arg11[%124, %c0_79, %c0_80] : memref<8x8x128xf32, #tpu.memory_space<vmem>>, vector<1x8x128xf32>
    %126 = vector.shape_cast %125 : vector<1x8x128xf32> to vector<8x128xf32>
    %cst_81 = arith.constant dense<0.000000e+00> : vector<8x128xf32>
    %127 = tpu.matmul %119, %102, %cst_81 {dimension_numbers = #tpu.dot_dimension_numbers<[1], [0], [0], [1], [0, 0, 1, 1], [], []>} : vector<8x128xf32>, vector<128x128xf32>, vector<8x128xf32> -> vector<8x128xf32>
    %128 = arith.addf %126, %127 : vector<8x128xf32>
    %129 = math.tanh %128 : vector<8x128xf32>
    %130 = arith.index_cast %c2_i32_78 : i32 to index
    %c0_82 = arith.constant 0 : index
    %c0_83 = arith.constant 0 : index
    %131 = vector.load %arg11[%130, %c0_82, %c0_83] : memref<8x8x128xf32, #tpu.memory_space<vmem>>, vector<1x8x128xf32>
    %132 = vector.shape_cast %131 : vector<1x8x128xf32> to vector<8x128xf32>
    %133 = vector.shape_cast %129 : vector<8x128xf32> to vector<1x8x128xf32>
    tpu.vector_store %arg11[%130, %c0_82, %c0_83], %133 {strides = array<i32>} : memref<8x8x128xf32, #tpu.memory_space<vmem>>, vector<1x8x128xf32>,
    %c3_i32_84 = arith.constant 3 : i32
    %134 = arith.index_cast %c3_i32_84 : i32 to index
    %c0_85 = arith.constant 0 : index
    %c0_86 = arith.constant 0 : index
    %135 = vector.load %arg11[%134, %c0_85, %c0_86] : memref<8x8x128xf32, #tpu.memory_space<vmem>>, vector<1x8x128xf32>
    %136 = vector.shape_cast %135 : vector<1x8x128xf32> to vector<8x128xf32>
    %cst_87 = arith.constant dense<0.000000e+00> : vector<8x128xf32>
    %137 = tpu.matmul %129, %102, %cst_87 {dimension_numbers = #tpu.dot_dimension_numbers<[1], [0], [0], [1], [0, 0, 1, 1], [], []>} : vector<8x128xf32>, vector<128x128xf32>, vector<8x128xf32> -> vector<8x128xf32>
    %138 = arith.addf %136, %137 : vector<8x128xf32>
    %139 = math.tanh %138 : vector<8x128xf32>
    %140 = arith.index_cast %c3_i32_84 : i32 to index
    %c0_88 = arith.constant 0 : index
    %c0_89 = arith.constant 0 : index
    %141 = vector.load %arg11[%140, %c0_88, %c0_89] : memref<8x8x128xf32, #tpu.memory_space<vmem>>, vector<1x8x128xf32>
    %142 = vector.shape_cast %141 : vector<1x8x128xf32> to vector<8x128xf32>
    %143 = vector.shape_cast %139 : vector<8x128xf32> to vector<1x8x128xf32>
    tpu.vector_store %arg11[%140, %c0_88, %c0_89], %143 {strides = array<i32>} : memref<8x8x128xf32, #tpu.memory_space<vmem>>, vector<1x8x128xf32>,
    %c4_i32_90 = arith.constant 4 : i32
    %144 = arith.index_cast %c4_i32_90 : i32 to index
    %c0_91 = arith.constant 0 : index
    %c0_92 = arith.constant 0 : index
    %145 = vector.load %arg11[%144, %c0_91, %c0_92] : memref<8x8x128xf32, #tpu.memory_space<vmem>>, vector<1x8x128xf32>
    %146 = vector.shape_cast %145 : vector<1x8x128xf32> to vector<8x128xf32>
    %cst_93 = arith.constant dense<0.000000e+00> : vector<8x128xf32>
    %147 = tpu.matmul %139, %102, %cst_93 {dimension_numbers = #tpu.dot_dimension_numbers<[1], [0], [0], [1], [0, 0, 1, 1], [], []>} : vector<8x128xf32>, vector<128x128xf32>, vector<8x128xf32> -> vector<8x128xf32>
    %148 = arith.addf %146, %147 : vector<8x128xf32>
    %149 = math.tanh %148 : vector<8x128xf32>
    %150 = arith.index_cast %c4_i32_90 : i32 to index
    %c0_94 = arith.constant 0 : index
    %c0_95 = arith.constant 0 : index
    %151 = vector.load %arg11[%150, %c0_94, %c0_95] : memref<8x8x128xf32, #tpu.memory_space<vmem>>, vector<1x8x128xf32>
    %152 = vector.shape_cast %151 : vector<1x8x128xf32> to vector<8x128xf32>
    %153 = vector.shape_cast %149 : vector<8x128xf32> to vector<1x8x128xf32>
    tpu.vector_store %arg11[%150, %c0_94, %c0_95], %153 {strides = array<i32>} : memref<8x8x128xf32, #tpu.memory_space<vmem>>, vector<1x8x128xf32>,
    %c5_i32_96 = arith.constant 5 : i32
    %154 = arith.index_cast %c5_i32_96 : i32 to index
    %c0_97 = arith.constant 0 : index
    %c0_98 = arith.constant 0 : index
    %155 = vector.load %arg11[%154, %c0_97, %c0_98] : memref<8x8x128xf32, #tpu.memory_space<vmem>>, vector<1x8x128xf32>
    %156 = vector.shape_cast %155 : vector<1x8x128xf32> to vector<8x128xf32>
    %cst_99 = arith.constant dense<0.000000e+00> : vector<8x128xf32>
    %157 = tpu.matmul %149, %102, %cst_99 {dimension_numbers = #tpu.dot_dimension_numbers<[1], [0], [0], [1], [0, 0, 1, 1], [], []>} : vector<8x128xf32>, vector<128x128xf32>, vector<8x128xf32> -> vector<8x128xf32>
    %158 = arith.addf %156, %157 : vector<8x128xf32>
    %159 = math.tanh %158 : vector<8x128xf32>
    %160 = arith.index_cast %c5_i32_96 : i32 to index
    %c0_100 = arith.constant 0 : index
    %c0_101 = arith.constant 0 : index
    %161 = vector.load %arg11[%160, %c0_100, %c0_101] : memref<8x8x128xf32, #tpu.memory_space<vmem>>, vector<1x8x128xf32>
    %162 = vector.shape_cast %161 : vector<1x8x128xf32> to vector<8x128xf32>
    %163 = vector.shape_cast %159 : vector<8x128xf32> to vector<1x8x128xf32>
    tpu.vector_store %arg11[%160, %c0_100, %c0_101], %163 {strides = array<i32>} : memref<8x8x128xf32, #tpu.memory_space<vmem>>, vector<1x8x128xf32>,
    %c6_i32_102 = arith.constant 6 : i32
    %164 = arith.index_cast %c6_i32_102 : i32 to index
    %c0_103 = arith.constant 0 : index
    %c0_104 = arith.constant 0 : index
    %165 = vector.load %arg11[%164, %c0_103, %c0_104] : memref<8x8x128xf32, #tpu.memory_space<vmem>>, vector<1x8x128xf32>
    %166 = vector.shape_cast %165 : vector<1x8x128xf32> to vector<8x128xf32>
    %cst_105 = arith.constant dense<0.000000e+00> : vector<8x128xf32>
    %167 = tpu.matmul %159, %102, %cst_105 {dimension_numbers = #tpu.dot_dimension_numbers<[1], [0], [0], [1], [0, 0, 1, 1], [], []>} : vector<8x128xf32>, vector<128x128xf32>, vector<8x128xf32> -> vector<8x128xf32>
    %168 = arith.addf %166, %167 : vector<8x128xf32>
    %169 = math.tanh %168 : vector<8x128xf32>
    %170 = arith.index_cast %c6_i32_102 : i32 to index
    %c0_106 = arith.constant 0 : index
    %c0_107 = arith.constant 0 : index
    %171 = vector.load %arg11[%170, %c0_106, %c0_107] : memref<8x8x128xf32, #tpu.memory_space<vmem>>, vector<1x8x128xf32>
    %172 = vector.shape_cast %171 : vector<1x8x128xf32> to vector<8x128xf32>
    %173 = vector.shape_cast %169 : vector<8x128xf32> to vector<1x8x128xf32>
    tpu.vector_store %arg11[%170, %c0_106, %c0_107], %173 {strides = array<i32>} : memref<8x8x128xf32, #tpu.memory_space<vmem>>, vector<1x8x128xf32>,
    %c7_i32_108 = arith.constant 7 : i32
    %174 = arith.index_cast %c7_i32_108 : i32 to index
    %c0_109 = arith.constant 0 : index
    %c0_110 = arith.constant 0 : index
    %175 = vector.load %arg11[%174, %c0_109, %c0_110] : memref<8x8x128xf32, #tpu.memory_space<vmem>>, vector<1x8x128xf32>
    %176 = vector.shape_cast %175 : vector<1x8x128xf32> to vector<8x128xf32>
    %cst_111 = arith.constant dense<0.000000e+00> : vector<8x128xf32>
    %177 = tpu.matmul %169, %102, %cst_111 {dimension_numbers = #tpu.dot_dimension_numbers<[1], [0], [0], [1], [0, 0, 1, 1], [], []>} : vector<8x128xf32>, vector<128x128xf32>, vector<8x128xf32> -> vector<8x128xf32>
    %178 = arith.addf %176, %177 : vector<8x128xf32>
    %179 = math.tanh %178 : vector<8x128xf32>
    %180 = arith.index_cast %c7_i32_108 : i32 to index
    %c0_112 = arith.constant 0 : index
    %c0_113 = arith.constant 0 : index
    %181 = vector.load %arg11[%180, %c0_112, %c0_113] : memref<8x8x128xf32, #tpu.memory_space<vmem>>, vector<1x8x128xf32>
    %182 = vector.shape_cast %181 : vector<1x8x128xf32> to vector<8x128xf32>
    %183 = vector.shape_cast %179 : vector<8x128xf32> to vector<1x8x128xf32>
    tpu.vector_store %arg11[%180, %c0_112, %c0_113], %183 {strides = array<i32>} : memref<8x8x128xf32, #tpu.memory_space<vmem>>, vector<1x8x128xf32>,
    %c8_i32_114 = arith.constant 8 : i32
    %c0_115 = arith.constant 0 : index
    %c0_116 = arith.constant 0 : index
    %184 = vector.load %arg8[%c0_115, %c0_116] : memref<128x128xf32, #tpu.memory_space<vmem>>, vector<128x128xf32>
    %cst_117 = arith.constant dense<0.000000e+00> : vector<8x128xf32>
    %185 = tpu.matmul %179, %184, %cst_117 {dimension_numbers = #tpu.dot_dimension_numbers<[1], [0], [0], [1], [0, 0, 1, 1], [], []>} : vector<8x128xf32>, vector<128x128xf32>, vector<8x128xf32> -> vector<8x128xf32>
    %c0_118 = arith.constant 0 : index
    %c0_119 = arith.constant 0 : index
    %186 = vector.load %arg9[%c0_118, %c0_119] : memref<1x128xf32, #tpu.memory_space<vmem>>, vector<1x128xf32>
    %187 = vector.broadcast %186 : vector<1x128xf32> to vector<8x128xf32>
    %188 = arith.addf %185, %187 : vector<8x128xf32>
    %c0_120 = arith.constant 0 : index
    %c0_121 = arith.constant 0 : index
    %189 = vector.load %arg10[%c0_120, %c0_121] : memref<8x128xf32, #tpu.memory_space<vmem>>, vector<8x128xf32>
    tpu.vector_store %arg10[%c0_120, %c0_121], %188 {strides = array<i32>} : memref<8x128xf32, #tpu.memory_space<vmem>>, vector<8x128xf32>,
    return
  }
  func.func @transform_0(%arg0: i32) -> (i32, i32, i32) {
    %c0_i32 = arith.constant 0 : i32
    %c0_i32_0 = arith.constant 0 : i32
    %c0_i32_1 = arith.constant 0 : i32
    return %c0_i32, %arg0, %c0_i32_0 : i32, i32, i32
  }
  func.func @transform_1(%arg0: i32) -> (i32, i32) {
    %c0_i32 = arith.constant 0 : i32
    %c0_i32_0 = arith.constant 0 : i32
    return %arg0, %c0_i32 : i32, i32
  }
  func.func @transform_2(%arg0: i32) -> (i32, i32) {
    %c0_i32 = arith.constant 0 : i32
    %c0_i32_0 = arith.constant 0 : i32
    %c0_i32_1 = arith.constant 0 : i32
    return %c0_i32, %c0_i32_0 : i32, i32
  }
  func.func @transform_3(%arg0: i32) -> (i32, i32) {
    %c0_i32 = arith.constant 0 : i32
    %c0_i32_0 = arith.constant 0 : i32
    %c0_i32_1 = arith.constant 0 : i32
    return %c0_i32, %c0_i32_0 : i32, i32
  }
  func.func @transform_4(%arg0: i32) -> (i32, i32) {
    %c0_i32 = arith.constant 0 : i32
    %c0_i32_0 = arith.constant 0 : i32
    %c0_i32_1 = arith.constant 0 : i32
    return %c0_i32, %c0_i32_0 : i32, i32
  }
  func.func @transform_5(%arg0: i32) -> (i32, i32) {
    %c0_i32 = arith.constant 0 : i32
    %c0_i32_0 = arith.constant 0 : i32
    %c0_i32_1 = arith.constant 0 : i32
    return %c0_i32, %c0_i32_0 : i32, i32
  }
  func.func @transform_6(%arg0: i32) -> (i32, i32) {
    %c0_i32 = arith.constant 0 : i32
    %c0_i32_0 = arith.constant 0 : i32
    %c0_i32_1 = arith.constant 0 : i32
    return %c0_i32, %c0_i32_0 : i32, i32
  }
  func.func @transform_7(%arg0: i32) -> (i32, i32) {
    %c0_i32 = arith.constant 0 : i32
    %c0_i32_0 = arith.constant 0 : i32
    %c0_i32_1 = arith.constant 0 : i32
    return %c0_i32, %c0_i32_0 : i32, i32
  }
  func.func @transform_8(%arg0: i32) -> (i32, i32) {
    %c0_i32 = arith.constant 0 : i32
    %c0_i32_0 = arith.constant 0 : i32
    %c0_i32_1 = arith.constant 0 : i32
    return %c0_i32, %c0_i32_0 : i32, i32
  }
  func.func @transform_9(%arg0: i32) -> (i32, i32) {
    %c0_i32 = arith.constant 0 : i32
    %c0_i32_0 = arith.constant 0 : i32
    return %arg0, %c0_i32 : i32, i32
  }
}

</mosaic_0001>

<llo_original>
// kernel: tpu_custom_call.1
$region0: #{tpu_custom_call.1}
  #allocation0 [shape = 'u32[]', space=smem, size = 0x4, offset = 0x4, fixed_abs, tag = 'smem constant byte address 0x4 - core index']
  #allocation1 [shape = 'u32[72,128]{1,0:T(1,128)}', space=vmem, size = 0x9000, scoped, tag = 'internal scratch']
  #allocation2 [shape = 'f32[8,8,128]{2,1,0:T(8,128)}', space=vmem, size = 0x8000, scoped, tag = 'scratch operand']
  %s0 = inlined_call_operand.hbm [shape: f32[8,8,18], index: 0, kind: input, shape index: {}]
  %s1 = inlined_call_operand.hbm [shape: f32[8,128], index: 1, kind: input, shape index: {}]
  %s2 = inlined_call_operand.hbm [shape: f32[18,128], index: 2, kind: input, shape index: {}]
  %s3 = inlined_call_operand.hbm [shape: f32[128,128], index: 3, kind: input, shape index: {}]
  %s4 = inlined_call_operand.hbm [shape: f32[128,128], index: 4, kind: input, shape index: {}]
  %s5 = inlined_call_operand.hbm [shape: f32[128,128], index: 5, kind: input, shape index: {}]
  %s6 = inlined_call_operand.vmem [shape: f32[1,128], index: 6, kind: input, shape index: {}]
  %s7 = inlined_call_operand.hbm [shape: f32[128,128], index: 7, kind: input, shape index: {}]
  %s8 = inlined_call_operand.vmem [shape: f32[1,128], index: 8, kind: input, shape index: {}]
  %s9 = inlined_call_operand.hbm [shape: f32[8,128], index: 9, kind: output, shape index: {}]
  %s10 = sld [smem:[#allocation0]]
  $region74: #{tpu_custom_call.1} parent=0
    _
  %s12 = ssub.s32 1, %s10
  %s13 = scalar_select 0, %s12, %s10
  $region1: #{tpu_custom_call.1} parent=0
    #allocation3 [shape = 'u8[32768]{0}', space=vmem, size = 0x8000, scoped, tag = 'input window, operand 0, single buffered']
    #allocation4 [shape = 's32[1]{0}', space=sflag, size = 0x4, scoped, tag = 'scoped memory for tpu_custom_call.1']
    #allocation5 [shape = 's32[1]{0}', space=sflag, size = 0x4, scoped, tag = 'scoped memory for tpu_custom_call.1']
    #allocation6 [shape = 'u8[4096]{0}', space=vmem, size = 0x1000, scoped, tag = 'input window, operand 1, single buffered']
    #allocation7 [shape = 's32[1]{0}', space=sflag, size = 0x4, scoped, tag = 'scoped memory for tpu_custom_call.1']
    #allocation8 [shape = 'u8[12288]{0}', space=vmem, size = 0x3000, scoped, tag = 'input window, operand 2, single buffered']
    #allocation9 [shape = 'u8[65536]{0}', space=vmem, size = 0x10000, scoped, tag = 'input window, operand 3, single buffered']
    #allocation10 [shape = 's32[1]{0}', space=sflag, size = 0x4, scoped, tag = 'scoped memory for tpu_custom_call.1']
    #allocation11 [shape = 'u8[65536]{0}', space=vmem, size = 0x10000, scoped, tag = 'input window, operand 4, single buffered']
    #allocation12 [shape = 'u8[65536]{0}', space=vmem, size = 0x10000, scoped, tag = 'input window, operand 5, single buffered']
    #allocation13 [shape = 's32[1]{0}', space=sflag, size = 0x4, scoped, tag = 'scoped memory for tpu_custom_call.1']
    #allocation14 [shape = 'u8[65536]{0}', space=vmem, size = 0x10000, scoped, tag = 'input window, operand 7, single buffered']
    #allocation15 [shape = 'u8[4096]{0}', space=vmem, size = 0x1000, scoped, tag = 'output window, operand 0, single buffered']
    %14 = vsyncpa [#allocation4], 0
    %15 = vsyncpa [#allocation7], 0
    %16 = vsyncpa [#allocation10], 0
    %17 = vsyncpa [#allocation13], 0
    %18 = vsyncpa [#allocation5], 0
    // Predicated region
    $region2: #{tpu_custom_call.1} parent=1 // pred_check
      _
    $region3: #{tpu_custom_call.1} parent=1 // pred_check_branch
      %20 = sbr.rel (0) target = $region5
    $region4: #{tpu_custom_call.1} parent=1 // pred_region
      %22 = vsyncadd [#allocation4], 0
      %s23 = sshll.u32 %s0, 4
      %s24 = int_to_ptr.hbm [resolvable:$true] %s23
      %s25 = sshll.u32 [#allocation3], 4
      %s26 = int_to_ptr.vmem [resolvable:$true] %s25
      %31 = dma.hbm_to_vmem [thread:$0]  %s24, 1024, %s26, [#allocation4], 128, 128, 8
    $region5: #{tpu_custom_call.1} parent=1 // pred_fallthru
      _
    // Predicated region
    $region6: #{tpu_custom_call.1} parent=1 // pred_check
      _
    $region7: #{tpu_custom_call.1} parent=1 // pred_check_branch
      %33 = sbr.rel (0) target = $region9
    $region8: #{tpu_custom_call.1} parent=1 // pred_region
      %35 = vsyncadd [#allocation7], 0
      %s37 = sshll.u32 %s1, 4
      %s38 = int_to_ptr.hbm [resolvable:$true] %s37
      %s39 = sshll.u32 [#allocation6], 4
      %s40 = int_to_ptr.vmem [resolvable:$true] %s39
      %42 = dma.hbm_to_vmem [thread:$0]  %s38, 128, %s40, [#allocation7]
    $region9: #{tpu_custom_call.1} parent=1 // pred_fallthru
      _
    // Predicated region
    $region10: #{tpu_custom_call.1} parent=1 // pred_check
      _
    $region11: #{tpu_custom_call.1} parent=1 // pred_check_branch
      %44 = sbr.rel (0) target = $region13
    $region12: #{tpu_custom_call.1} parent=1 // pred_region
      %46 = vsyncadd [#allocation7], 0
      %s47 = sshll.u32 %s2, 4
      %s48 = int_to_ptr.hbm [resolvable:$true] %s47
      %s49 = sshll.u32 [#allocation8], 4
      %s50 = int_to_ptr.vmem [resolvable:$true] %s49
      %55 = dma.hbm_to_vmem [thread:$0]  %s48, 384, %s50, [#allocation7], 128, 128, 8
    $region13: #{tpu_custom_call.1} parent=1 // pred_fallthru
      _
    // Predicated region
    $region14: #{tpu_custom_call.1} parent=1 // pred_check
      _
    $region15: #{tpu_custom_call.1} parent=1 // pred_check_branch
      %57 = sbr.rel (0) target = $region17
    $region16: #{tpu_custom_call.1} parent=1 // pred_region
      %59 = vsyncadd [#allocation10], 0
      %s60 = sshll.u32 %s3, 4
      %s61 = int_to_ptr.hbm [resolvable:$true] %s60
      %s62 = sshll.u32 [#allocation9], 4
      %s63 = int_to_ptr.vmem [resolvable:$true] %s62
      %68 = dma.hbm_to_vmem [thread:$0]  %s61, 2048, %s63, [#allocation10], 128, 128, 8
    $region17: #{tpu_custom_call.1} parent=1 // pred_fallthru
      _
    // Predicated region
    $region18: #{tpu_custom_call.1} parent=1 // pred_check
      _
    $region19: #{tpu_custom_call.1} parent=1 // pred_check_branch
      %70 = sbr.rel (0) target = $region21
    $region20: #{tpu_custom_call.1} parent=1 // pred_region
      %72 = vsyncadd [#allocation10], 0
      %s73 = sshll.u32 %s4, 4
      %s74 = int_to_ptr.hbm [resolvable:$true] %s73
      %s75 = sshll.u32 [#allocation11], 4
      %s76 = int_to_ptr.vmem [resolvable:$true] %s75
      %81 = dma.hbm_to_vmem [thread:$0]  %s74, 2048, %s76, [#allocation10], 128, 128, 8
    $region21: #{tpu_custom_call.1} parent=1 // pred_fallthru
      _
    // Predicated region
    $region22: #{tpu_custom_call.1} parent=1 // pred_check
      _
    $region23: #{tpu_custom_call.1} parent=1 // pred_check_branch
      %83 = sbr.rel (0) target = $region25
    $region24: #{tpu_custom_call.1} parent=1 // pred_region
      %85 = vsyncadd [#allocation13], 0
      %s86 = sshll.u32 %s5, 4
      %s87 = int_to_ptr.hbm [resolvable:$true] %s86
      %s88 = sshll.u32 [#allocation12], 4
      %s89 = int_to_ptr.vmem [resolvable:$true] %s88
      %94 = dma.hbm_to_vmem [thread:$0]  %s87, 2048, %s89, [#allocation13], 128, 128, 8
    $region25: #{tpu_custom_call.1} parent=1 // pred_fallthru
      _
    // Predicated region
    $region26: #{tpu_custom_call.1} parent=1 // pred_check
      _
    $region27: #{tpu_custom_call.1} parent=1 // pred_check_branch
      %96 = sbr.rel (0) target = $region29
    $region28: #{tpu_custom_call.1} parent=1 // pred_region
      _
    $region29: #{tpu_custom_call.1} parent=1 // pred_fallthru
      _
    // Predicated region
    $region30: #{tpu_custom_call.1} parent=1 // pred_check
      _
    $region31: #{tpu_custom_call.1} parent=1 // pred_check_branch
      %98 = sbr.rel (0) target = $region33
    $region32: #{tpu_custom_call.1} parent=1 // pred_region
      %100 = vsyncadd [#allocation13], 0
      %s101 = sshll.u32 %s7, 4
      %s102 = int_to_ptr.hbm [resolvable:$true] %s101
      %s103 = sshll.u32 [#allocation14], 4
      %s104 = int_to_ptr.vmem [resolvable:$true] %s103
      %109 = dma.hbm_to_vmem [thread:$0]  %s102, 2048, %s104, [#allocation13], 128, 128, 8
    $region33: #{tpu_custom_call.1} parent=1 // pred_fallthru
      _
    // Predicated region
    $region34: #{tpu_custom_call.1} parent=1 // pred_check
      _
    $region35: #{tpu_custom_call.1} parent=1 // pred_check_branch
      %111 = sbr.rel (0) target = $region37
    $region36: #{tpu_custom_call.1} parent=1 // pred_region
      _
    $region37: #{tpu_custom_call.1} parent=1 // pred_fallthru
      _
    // Predicated region
    $region38: #{tpu_custom_call.1} parent=1 // pred_check
      _
    $region39: #{tpu_custom_call.1} parent=1 // pred_check_branch
      %113 = sbr.rel (0) target = $region41
    $region40: #{tpu_custom_call.1} parent=1 // pred_region
      %115 = dma.done [#allocation4], 1024
    $region41: #{tpu_custom_call.1} parent=1 // pred_fallthru
      _
    // Predicated region
    $region42: #{tpu_custom_call.1} parent=1 // pred_check
      _
    $region43: #{tpu_custom_call.1} parent=1 // pred_check_branch
      %117 = sbr.rel (0) target = $region45
    $region44: #{tpu_custom_call.1} parent=1 // pred_region
      %119 = dma.done [#allocation7], 128
    $region45: #{tpu_custom_call.1} parent=1 // pred_fallthru
      _
    // Predicated region
    $region46: #{tpu_custom_call.1} parent=1 // pred_check
      _
    $region47: #{tpu_custom_call.1} parent=1 // pred_check_branch
      %121 = sbr.rel (0) target = $region49
    $region48: #{tpu_custom_call.1} parent=1 // pred_region
      %123 = dma.done [#allocation7], 384
    $region49: #{tpu_custom_call.1} parent=1 // pred_fallthru
      _
    // Predicated region
    $region50: #{tpu_custom_call.1} parent=1 // pred_check
      _
    $region51: #{tpu_custom_call.1} parent=1 // pred_check_branch
      %125 = sbr.rel (0) target = $region53
    $region52: #{tpu_custom_call.1} parent=1 // pred_region
      %127 = dma.done [#allocation10], 2048
    $region53: #{tpu_custom_call.1} parent=1 // pred_fallthru
      _
    // Predicated region
    $region54: #{tpu_custom_call.1} parent=1 // pred_check
      _
    $region55: #{tpu_custom_call.1} parent=1 // pred_check_branch
      %129 = sbr.rel (0) target = $region57
    $region56: #{tpu_custom_call.1} parent=1 // pred_region
      %131 = dma.done [#allocation10], 2048
    $region57: #{tpu_custom_call.1} parent=1 // pred_fallthru
      _
    // Predicated region
    $region58: #{tpu_custom_call.1} parent=1 // pred_check
      _
    $region59: #{tpu_custom_call.1} parent=1 // pred_check_branch
      %133 = sbr.rel (0) target = $region61
    $region60: #{tpu_custom_call.1} parent=1 // pred_region
      %135 = dma.done [#allocation13], 2048
    $region61: #{tpu_custom_call.1} parent=1 // pred_fallthru
      _
    // Predicated region
    $region62: #{tpu_custom_call.1} parent=1 // pred_check
      _
    $region63: #{tpu_custom_call.1} parent=1 // pred_check_branch
      %137 = sbr.rel (0) target = $region65
    $region64: #{tpu_custom_call.1} parent=1 // pred_region
      %139 = dma.done [#allocation13], 2048
    $region65: #{tpu_custom_call.1} parent=1 // pred_fallthru
      _
    %v140 = vld [vmem:[#allocation3] sm:$0xff]
    %v141 = vld [vmem:[#allocation3 + $0x8] sm:$0xff]
    %v142 = vld [vmem:[#allocation3 + $0x10] sm:$0xff]
    %v143 = vld [vmem:[#allocation3 + $0x18] sm:$0xff]
    %v144 = vld [vmem:[#allocation3 + $0x20] sm:$0xff]
    %v145 = vld [vmem:[#allocation3 + $0x28] sm:$0xff]
    %v146 = vld [vmem:[#allocation3 + $0x30] sm:$0xff]
    %v147 = vld [vmem:[#allocation3 + $0x38] sm:$0xff]
    %v148 = vld [vmem:[#allocation8] sm:$0xff]
    %v149 = vld [vmem:[#allocation8 + $0x8] sm:$0xff]
    %v150 = vld [vmem:[#allocation8 + $0x10] sm:$0x3]
    %vm151 = vcmask 146432
    %v153 = vsel %vm151, %v140, 0
    %v156 = vsel %vm151, %v141, 0
    %v159 = vsel %vm151, %v142, 0
    %v162 = vsel %vm151, %v143, 0
    %v165 = vsel %vm151, %v144, 0
    %v168 = vsel %vm151, %v145, 0
    %v171 = vsel %vm151, %v146, 0
    %v174 = vsel %vm151, %v147, 0
    %vm176 = vcmask 1041408
    %v178 = vsel %vm176, %v150, 0
    %180 = vmatpush.msra.mxu0 0.0
    %181 = vmatpush.msra.mxu0 0.0
    %182 = vmatpush.msra.mxu0 0.0
    %183 = vmatpush.msra.mxu0 0.0
    %184 = vmatpush.msra.mxu0 0.0
    %185 = vmatpush.msra.mxu0 0.0
    %186 = vmatpush.msra.mxu0 0.0
    %187 = vmatpush.msra.mxu0 0.0
    %188 = vmatpush.msra.mxu0 0.0
    %189 = vmatpush.msra.mxu0 0.0
    %190 = vmatpush.msra.mxu0 0.0
    %191 = vmatpush.msra.mxu0 0.0
    %192 = vmatpush.msra.mxu0 0.0
    %193 = vmatpush.msra.mxu0 %v178
    %194 = vmatpush.msra.mxu0 %v149
    %195 = vmatpush.msra.mxu0 %v148
    %196 = vmatmul.f32.gmra.mxu0 %v153
    %v197 = vpop.f32.mrf.mxu0
    %v198 = vadd.f32 0.0, %v197
    %199 = vmatmul.f32.gmra.mxu0 %v156
    %v200 = vpop.f32.mrf.mxu0
    %v201 = vadd.f32 0.0, %v200
    %202 = vmatmul.f32.gmra.mxu0 %v159
    %v203 = vpop.f32.mrf.mxu0
    %v204 = vadd.f32 0.0, %v203
    %205 = vmatmul.f32.gmra.mxu0 %v162
    %v206 = vpop.f32.mrf.mxu0
    %v207 = vadd.f32 0.0, %v206
    %208 = vmatmul.f32.gmra.mxu0 %v165
    %v209 = vpop.f32.mrf.mxu0
    %v210 = vadd.f32 0.0, %v209
    %211 = vmatmul.f32.gmra.mxu0 %v168
    %v212 = vpop.f32.mrf.mxu0
    %v213 = vadd.f32 0.0, %v212
    %214 = vmatmul.f32.gmra.mxu0 %v171
    %v215 = vpop.f32.mrf.mxu0
    %v216 = vadd.f32 0.0, %v215
    %217 = vmatmul.f32.gmra.mxu0 %v174
    %v218 = vpop.f32.mrf.mxu0
    %v219 = vadd.f32 0.0, %v218
    %220 = vdwg.mxu0
    %v221 = vld [vmem:[#allocation6] sm:$0xff]
    %v222 = vadd.f32 %v198, %v221
    %v223 = vadd.f32 %v201, %v221
    %v224 = vadd.f32 %v204, %v221
    %v225 = vadd.f32 %v207, %v221
    %v226 = vadd.f32 %v210, %v221
    %v227 = vadd.f32 %v213, %v221
    %v228 = vadd.f32 %v216, %v221
    %v229 = vadd.f32 %v219, %v221
    %230 = vst [vmem:[#allocation2] sm:$0xff] %v222
    %231 = vst [vmem:[#allocation2 + $0x8] sm:$0xff] %v223
    %232 = vst [vmem:[#allocation2 + $0x10] sm:$0xff] %v224
    %233 = vst [vmem:[#allocation2 + $0x18] sm:$0xff] %v225
    %234 = vst [vmem:[#allocation2 + $0x20] sm:$0xff] %v226
    %235 = vst [vmem:[#allocation2 + $0x28] sm:$0xff] %v227
    %236 = vst [vmem:[#allocation2 + $0x30] sm:$0xff] %v228
    %237 = vst [vmem:[#allocation2 + $0x38] sm:$0xff] %v229
    %v238 = vld [vmem:[#allocation9] sm:$0xff]
    %v239 = vld [vmem:[#allocation9 + $0x8] sm:$0xff]
    %v240 = vld [vmem:[#allocation9 + $0x10] sm:$0xff]
    %v241 = vld [vmem:[#allocation9 + $0x18] sm:$0xff]
    %v242 = vld [vmem:[#allocation9 + $0x20] sm:$0xff]
    %v243 = vld [vmem:[#allocation9 + $0x28] sm:$0xff]
    %v244 = vld [vmem:[#allocation9 + $0x30] sm:$0xff]
    %v245 = vld [vmem:[#allocation9 + $0x38] sm:$0xff]
    %v246 = vld [vmem:[#allocation9 + $0x40] sm:$0xff]
    %v247 = vld [vmem:[#allocation9 + $0x48] sm:$0xff]
    %v248 = vld [vmem:[#allocation9 + $0x50] sm:$0xff]
    %v249 = vld [vmem:[#allocation9 + $0x58] sm:$0xff]
    %v250 = vld [vmem:[#allocation9 + $0x60] sm:$0xff]
    %v251 = vld [vmem:[#allocation9 + $0x68] sm:$0xff]
    %v252 = vld [vmem:[#allocation9 + $0x70] sm:$0xff]
    %v253 = vld [vmem:[#allocation9 + $0x78] sm:$0xff]
    %v254 = vld [vmem:[#allocation2] sm:$0xff]
    %255 = vmatpush.msra.mxu0 %v253
    %256 = vmatpush.msra.mxu0 %v252
    %257 = vmatpush.msra.mxu0 %v251
    %258 = vmatpush.msra.mxu0 %v250
    %259 = vmatpush.msra.mxu0 %v249
    %260 = vmatpush.msra.mxu0 %v248
    %261 = vmatpush.msra.mxu0 %v247
    %262 = vmatpush.msra.mxu0 %v246
    %263 = vmatpush.msra.mxu0 %v245
    %264 = vmatpush.msra.mxu0 %v244
    %265 = vmatpush.msra.mxu0 %v243
    %266 = vmatpush.msra.mxu0 %v242
    %267 = vmatpush.msra.mxu0 %v241
    %268 = vmatpush.msra.mxu0 %v240
    %269 = vmatpush.msra.mxu0 %v239
    %270 = vmatpush.msra.mxu0 %v238
    %271 = vmatmul.f32.gmra.mxu0 0.0
    %v272 = vpop.f32.mrf.mxu0
    %v273 = vadd.f32 0.0, %v272
    %274 = vdwg.mxu0
    %v275 = vadd.f32 %v254, %v273
    %v276 = vtanh.pop %v275
    %277 = vst [vmem:[#allocation2] sm:$0xff] %v276
    %s278 = scalar_lea.vmem [#allocation2], 8
    %v279 = vld [vmem:[%s278] sm:$0xff]
    %280 = vmatpush.msra.mxu0 %v253
    %281 = vmatpush.msra.mxu0 %v252
    %282 = vmatpush.msra.mxu0 %v251
    %283 = vmatpush.msra.mxu0 %v250
    %284 = vmatpush.msra.mxu0 %v249
    %285 = vmatpush.msra.mxu0 %v248
    %286 = vmatpush.msra.mxu0 %v247
    %287 = vmatpush.msra.mxu0 %v246
    %288 = vmatpush.msra.mxu0 %v245
    %289 = vmatpush.msra.mxu0 %v244
    %290 = vmatpush.msra.mxu0 %v243
    %291 = vmatpush.msra.mxu0 %v242
    %292 = vmatpush.msra.mxu0 %v241
    %293 = vmatpush.msra.mxu0 %v240
    %294 = vmatpush.msra.mxu0 %v239
    %295 = vmatpush.msra.mxu0 %v238
    %296 = vmatmul.f32.gmra.mxu0 %v276
    %v297 = vpop.f32.mrf.mxu0
    %v298 = vadd.f32 0.0, %v297
    %299 = vdwg.mxu0
    %v300 = vadd.f32 %v279, %v298
    %v301 = vtanh.pop %v300
    %302 = vst [vmem:[%s278] sm:$0xff] %v301
    %s303 = scalar_lea.vmem [#allocation2], 16
    %v304 = vld [vmem:[%s303] sm:$0xff]
    %305 = vmatpush.msra.mxu0 %v253
    %306 = vmatpush.msra.mxu0 %v252
    %307 = vmatpush.msra.mxu0 %v251
    %308 = vmatpush.msra.mxu0 %v250
    %309 = vmatpush.msra.mxu0 %v249
    %310 = vmatpush.msra.mxu0 %v248
    %311 = vmatpush.msra.mxu0 %v247
    %312 = vmatpush.msra.mxu0 %v246
    %313 = vmatpush.msra.mxu0 %v245
    %314 = vmatpush.msra.mxu0 %v244
    %315 = vmatpush.msra.mxu0 %v243
    %316 = vmatpush.msra.mxu0 %v242
    %317 = vmatpush.msra.mxu0 %v241
    %318 = vmatpush.msra.mxu0 %v240
    %319 = vmatpush.msra.mxu0 %v239
    %320 = vmatpush.msra.mxu0 %v238
    %321 = vmatmul.f32.gmra.mxu0 %v301
    %v322 = vpop.f32.mrf.mxu0
    %v323 = vadd.f32 0.0, %v322
    %324 = vdwg.mxu0
    %v325 = vadd.f32 %v304, %v323
    %v326 = vtanh.pop %v325
    %327 = vst [vmem:[%s303] sm:$0xff] %v326
    %s328 = scalar_lea.vmem [#allocation2], 24
    %v329 = vld [vmem:[%s328] sm:$0xff]
    %330 = vmatpush.msra.mxu0 %v253
    %331 = vmatpush.msra.mxu0 %v252
    %332 = vmatpush.msra.mxu0 %v251
    %333 = vmatpush.msra.mxu0 %v250
    %334 = vmatpush.msra.mxu0 %v249
    %335 = vmatpush.msra.mxu0 %v248
    %336 = vmatpush.msra.mxu0 %v247
    %337 = vmatpush.msra.mxu0 %v246
    %338 = vmatpush.msra.mxu0 %v245
    %339 = vmatpush.msra.mxu0 %v244
    %340 = vmatpush.msra.mxu0 %v243
    %341 = vmatpush.msra.mxu0 %v242
    %342 = vmatpush.msra.mxu0 %v241
    %343 = vmatpush.msra.mxu0 %v240
    %344 = vmatpush.msra.mxu0 %v239
    %345 = vmatpush.msra.mxu0 %v238
    %346 = vmatmul.f32.gmra.mxu0 %v326
    %v347 = vpop.f32.mrf.mxu0
    %v348 = vadd.f32 0.0, %v347
    %349 = vdwg.mxu0
    %v350 = vadd.f32 %v329, %v348
    %v351 = vtanh.pop %v350
    %352 = vst [vmem:[%s328] sm:$0xff] %v351
    %s353 = scalar_lea.vmem [#allocation2], 32
    %v354 = vld [vmem:[%s353] sm:$0xff]
    %355 = vmatpush.msra.mxu0 %v253
    %356 = vmatpush.msra.mxu0 %v252
    %357 = vmatpush.msra.mxu0 %v251
    %358 = vmatpush.msra.mxu0 %v250
    %359 = vmatpush.msra.mxu0 %v249
    %360 = vmatpush.msra.mxu0 %v248
    %361 = vmatpush.msra.mxu0 %v247
    %362 = vmatpush.msra.mxu0 %v246
    %363 = vmatpush.msra.mxu0 %v245
    %364 = vmatpush.msra.mxu0 %v244
    %365 = vmatpush.msra.mxu0 %v243
    %366 = vmatpush.msra.mxu0 %v242
    %367 = vmatpush.msra.mxu0 %v241
    %368 = vmatpush.msra.mxu0 %v240
    %369 = vmatpush.msra.mxu0 %v239
    %370 = vmatpush.msra.mxu0 %v238
    %371 = vmatmul.f32.gmra.mxu0 %v351
    %v372 = vpop.f32.mrf.mxu0
    %v373 = vadd.f32 0.0, %v372
    %374 = vdwg.mxu0
    %v375 = vadd.f32 %v354, %v373
    %v376 = vtanh.pop %v375
    %377 = vst [vmem:[%s353] sm:$0xff] %v376
    %s378 = scalar_lea.vmem [#allocation2], 40
    %v379 = vld [vmem:[%s378] sm:$0xff]
    %380 = vmatpush.msra.mxu0 %v253
    %381 = vmatpush.msra.mxu0 %v252
    %382 = vmatpush.msra.mxu0 %v251
    %383 = vmatpush.msra.mxu0 %v250
    %384 = vmatpush.msra.mxu0 %v249
    %385 = vmatpush.msra.mxu0 %v248
    %386 = vmatpush.msra.mxu0 %v247
    %387 = vmatpush.msra.mxu0 %v246
    %388 = vmatpush.msra.mxu0 %v245
    %389 = vmatpush.msra.mxu0 %v244
    %390 = vmatpush.msra.mxu0 %v243
    %391 = vmatpush.msra.mxu0 %v242
    %392 = vmatpush.msra.mxu0 %v241
    %393 = vmatpush.msra.mxu0 %v240
    %394 = vmatpush.msra.mxu0 %v239
    %395 = vmatpush.msra.mxu0 %v238
    %396 = vmatmul.f32.gmra.mxu0 %v376
    %v397 = vpop.f32.mrf.mxu0
    %v398 = vadd.f32 0.0, %v397
    %399 = vdwg.mxu0
    %v400 = vadd.f32 %v379, %v398
    %v401 = vtanh.pop %v400
    %402 = vst [vmem:[%s378] sm:$0xff] %v401
    %s403 = scalar_lea.vmem [#allocation2], 48
    %v404 = vld [vmem:[%s403] sm:$0xff]
    %405 = vmatpush.msra.mxu0 %v253
    %406 = vmatpush.msra.mxu0 %v252
    %407 = vmatpush.msra.mxu0 %v251
    %408 = vmatpush.msra.mxu0 %v250
    %409 = vmatpush.msra.mxu0 %v249
    %410 = vmatpush.msra.mxu0 %v248
    %411 = vmatpush.msra.mxu0 %v247
    %412 = vmatpush.msra.mxu0 %v246
    %413 = vmatpush.msra.mxu0 %v245
    %414 = vmatpush.msra.mxu0 %v244
    %415 = vmatpush.msra.mxu0 %v243
    %416 = vmatpush.msra.mxu0 %v242
    %417 = vmatpush.msra.mxu0 %v241
    %418 = vmatpush.msra.mxu0 %v240
    %419 = vmatpush.msra.mxu0 %v239
    %420 = vmatpush.msra.mxu0 %v238
    %421 = vmatmul.f32.gmra.mxu0 %v401
    %v422 = vpop.f32.mrf.mxu0
    %v423 = vadd.f32 0.0, %v422
    %424 = vdwg.mxu0
    %v425 = vadd.f32 %v404, %v423
    %v426 = vtanh.pop %v425
    %427 = vst [vmem:[%s403] sm:$0xff] %v426
    %s428 = scalar_lea.vmem [#allocation2], 56
    %v429 = vld [vmem:[%s428] sm:$0xff]
    %430 = vmatpush.msra.mxu0 %v253
    %431 = vmatpush.msra.mxu0 %v252
    %432 = vmatpush.msra.mxu0 %v251
    %433 = vmatpush.msra.mxu0 %v250
    %434 = vmatpush.msra.mxu0 %v249
    %435 = vmatpush.msra.mxu0 %v248
    %436 = vmatpush.msra.mxu0 %v247
    %437 = vmatpush.msra.mxu0 %v246
    %438 = vmatpush.msra.mxu0 %v245
    %439 = vmatpush.msra.mxu0 %v244
    %440 = vmatpush.msra.mxu0 %v243
    %441 = vmatpush.msra.mxu0 %v242
    %442 = vmatpush.msra.mxu0 %v241
    %443 = vmatpush.msra.mxu0 %v240
    %444 = vmatpush.msra.mxu0 %v239
    %445 = vmatpush.msra.mxu0 %v238
    %446 = vmatmul.f32.gmra.mxu0 %v426
    %v447 = vpop.f32.mrf.mxu0
    %v448 = vadd.f32 0.0, %v447
    %449 = vdwg.mxu0
    %v450 = vadd.f32 %v429, %v448
    %v451 = vtanh.pop %v450
    %452 = vst [vmem:[%s428] sm:$0xff] %v451
    %v453 = vld [vmem:[#allocation2] sm:$0xff]
    %v454 = vld [vmem:[#allocation2 + $0x8] sm:$0xff]
    %v455 = vld [vmem:[#allocation2 + $0x10] sm:$0xff]
    %v456 = vld [vmem:[#allocation2 + $0x18] sm:$0xff]
    %v457 = vld [vmem:[#allocation2 + $0x20] sm:$0xff]
    %v458 = vld [vmem:[#allocation2 + $0x28] sm:$0xff]
    %v459 = vld [vmem:[#allocation2 + $0x30] sm:$0xff]
    %v460 = vld [vmem:[#allocation2 + $0x38] sm:$0xff]
    %v461 = vld [vmem:[#allocation11] sm:$0xff]
    %v462 = vld [vmem:[#allocation11 + $0x8] sm:$0xff]
    %v463 = vld [vmem:[#allocation11 + $0x10] sm:$0xff]
    %v464 = vld [vmem:[#allocation11 + $0x18] sm:$0xff]
    %v465 = vld [vmem:[#allocation11 + $0x20] sm:$0xff]
    %v466 = vld [vmem:[#allocation11 + $0x28] sm:$0xff]
    %v467 = vld [vmem:[#allocation11 + $0x30] sm:$0xff]
    %v468 = vld [vmem:[#allocation11 + $0x38] sm:$0xff]
    %v469 = vld [vmem:[#allocation11 + $0x40] sm:$0xff]
    %v470 = vld [vmem:[#allocation11 + $0x48] sm:$0xff]
    %v471 = vld [vmem:[#allocation11 + $0x50] sm:$0xff]
    %v472 = vld [vmem:[#allocation11 + $0x58] sm:$0xff]
    %v473 = vld [vmem:[#allocation11 + $0x60] sm:$0xff]
    %v474 = vld [vmem:[#allocation11 + $0x68] sm:$0xff]
    %v475 = vld [vmem:[#allocation11 + $0x70] sm:$0xff]
    %v476 = vld [vmem:[#allocation11 + $0x78] sm:$0xff]
    %477 = vmatpush.msra.mxu0 %v476
    %478 = vmatpush.msra.mxu0 %v475
    %479 = vmatpush.msra.mxu0 %v474
    %480 = vmatpush.msra.mxu0 %v473
    %481 = vmatpush.msra.mxu0 %v472
    %482 = vmatpush.msra.mxu0 %v471
    %483 = vmatpush.msra.mxu0 %v470
    %484 = vmatpush.msra.mxu0 %v469
    %485 = vmatpush.msra.mxu0 %v468
    %486 = vmatpush.msra.mxu0 %v467
    %487 = vmatpush.msra.mxu0 %v466
    %488 = vmatpush.msra.mxu0 %v465
    %489 = vmatpush.msra.mxu0 %v464
    %490 = vmatpush.msra.mxu0 %v463
    %491 = vmatpush.msra.mxu0 %v462
    %492 = vmatpush.msra.mxu0 %v461
    %493 = vmatmul.f32.gmra.mxu0 %v453
    %v494 = vpop.f32.mrf.mxu0
    %v495 = vadd.f32 0.0, %v494
    %496 = vmatmul.f32.gmra.mxu0 %v454
    %v497 = vpop.f32.mrf.mxu0
    %v498 = vadd.f32 0.0, %v497
    %499 = vmatmul.f32.gmra.mxu0 %v455
    %v500 = vpop.f32.mrf.mxu0
    %v501 = vadd.f32 0.0, %v500
    %502 = vmatmul.f32.gmra.mxu0 %v456
    %v503 = vpop.f32.mrf.mxu0
    %v504 = vadd.f32 0.0, %v503
    %505 = vmatmul.f32.gmra.mxu0 %v457
    %v506 = vpop.f32.mrf.mxu0
    %v507 = vadd.f32 0.0, %v506
    %508 = vmatmul.f32.gmra.mxu0 %v458
    %v509 = vpop.f32.mrf.mxu0
    %v510 = vadd.f32 0.0, %v509
    %511 = vmatmul.f32.gmra.mxu0 %v459
    %v512 = vpop.f32.mrf.mxu0
    %v513 = vadd.f32 0.0, %v512
    %514 = vmatmul.f32.gmra.mxu0 %v460
    %v515 = vpop.f32.mrf.mxu0
    %v516 = vadd.f32 0.0, %v515
    %517 = vdwg.mxu0
    %v518 = vld [vmem:[%s6] sm:$0x1]
    %v520 = vperm.slane %v518, 0
    %v522 = vadd.f32 %v495, %v520
    %v523 = vadd.f32 %v498, %v520
    %v524 = vadd.f32 %v501, %v520
    %v525 = vadd.f32 %v504, %v520
    %v526 = vadd.f32 %v507, %v520
    %v527 = vadd.f32 %v510, %v520
    %v528 = vadd.f32 %v513, %v520
    %v529 = vadd.f32 %v516, %v520
    %530 = vst [vmem:[#allocation2] sm:$0xff] %v522
    %531 = vst [vmem:[#allocation2 + $0x8] sm:$0xff] %v523
    %532 = vst [vmem:[#allocation2 + $0x10] sm:$0xff] %v524
    %533 = vst [vmem:[#allocation2 + $0x18] sm:$0xff] %v525
    %534 = vst [vmem:[#allocation2 + $0x20] sm:$0xff] %v526
    %535 = vst [vmem:[#allocation2 + $0x28] sm:$0xff] %v527
    %536 = vst [vmem:[#allocation2 + $0x30] sm:$0xff] %v528
    %537 = vst [vmem:[#allocation2 + $0x38] sm:$0xff] %v529
    %v538 = vld [vmem:[#allocation12] sm:$0xff]
    %v539 = vld [vmem:[#allocation12 + $0x8] sm:$0xff]
    %v540 = vld [vmem:[#allocation12 + $0x10] sm:$0xff]
    %v541 = vld [vmem:[#allocation12 + $0x18] sm:$0xff]
    %v542 = vld [vmem:[#allocation12 + $0x20] sm:$0xff]
    %v543 = vld [vmem:[#allocation12 + $0x28] sm:$0xff]
    %v544 = vld [vmem:[#allocation12 + $0x30] sm:$0xff]
    %v545 = vld [vmem:[#allocation12 + $0x38] sm:$0xff]
    %v546 = vld [vmem:[#allocation12 + $0x40] sm:$0xff]
    %v547 = vld [vmem:[#allocation12 + $0x48] sm:$0xff]
    %v548 = vld [vmem:[#allocation12 + $0x50] sm:$0xff]
    %v549 = vld [vmem:[#allocation12 + $0x58] sm:$0xff]
    %v550 = vld [vmem:[#allocation12 + $0x60] sm:$0xff]
    %v551 = vld [vmem:[#allocation12 + $0x68] sm:$0xff]
    %v552 = vld [vmem:[#allocation12 + $0x70] sm:$0xff]
    %v553 = vld [vmem:[#allocation12 + $0x78] sm:$0xff]
    %v554 = vld [vmem:[#allocation2] sm:$0xff]
    %555 = vmatpush.msra.mxu0 %v553
    %556 = vmatpush.msra.mxu0 %v552
    %557 = vmatpush.msra.mxu0 %v551
    %558 = vmatpush.msra.mxu0 %v550
    %559 = vmatpush.msra.mxu0 %v549
    %560 = vmatpush.msra.mxu0 %v548
    %561 = vmatpush.msra.mxu0 %v547
    %562 = vmatpush.msra.mxu0 %v546
    %563 = vmatpush.msra.mxu0 %v545
    %564 = vmatpush.msra.mxu0 %v544
    %565 = vmatpush.msra.mxu0 %v543
    %566 = vmatpush.msra.mxu0 %v542
    %567 = vmatpush.msra.mxu0 %v541
    %568 = vmatpush.msra.mxu0 %v540
    %569 = vmatpush.msra.mxu0 %v539
    %570 = vmatpush.msra.mxu0 %v538
    %571 = vmatmul.f32.gmra.mxu0 0.0
    %v572 = vpop.f32.mrf.mxu0
    %v573 = vadd.f32 0.0, %v572
    %574 = vdwg.mxu0
    %v575 = vadd.f32 %v554, %v573
    %v576 = vtanh.pop %v575
    %577 = vst [vmem:[#allocation2] sm:$0xff] %v576
    %v578 = vld [vmem:[%s278] sm:$0xff]
    %579 = vmatpush.msra.mxu0 %v553
    %580 = vmatpush.msra.mxu0 %v552
    %581 = vmatpush.msra.mxu0 %v551
    %582 = vmatpush.msra.mxu0 %v550
    %583 = vmatpush.msra.mxu0 %v549
    %584 = vmatpush.msra.mxu0 %v548
    %585 = vmatpush.msra.mxu0 %v547
    %586 = vmatpush.msra.mxu0 %v546
    %587 = vmatpush.msra.mxu0 %v545
    %588 = vmatpush.msra.mxu0 %v544
    %589 = vmatpush.msra.mxu0 %v543
    %590 = vmatpush.msra.mxu0 %v542
    %591 = vmatpush.msra.mxu0 %v541
    %592 = vmatpush.msra.mxu0 %v540
    %593 = vmatpush.msra.mxu0 %v539
    %594 = vmatpush.msra.mxu0 %v538
    %595 = vmatmul.f32.gmra.mxu0 %v576
    %v596 = vpop.f32.mrf.mxu0
    %v597 = vadd.f32 0.0, %v596
    %598 = vdwg.mxu0
    %v599 = vadd.f32 %v578, %v597
    %v600 = vtanh.pop %v599
    %601 = vst [vmem:[%s278] sm:$0xff] %v600
    %v602 = vld [vmem:[%s303] sm:$0xff]
    %603 = vmatpush.msra.mxu0 %v553
    %604 = vmatpush.msra.mxu0 %v552
    %605 = vmatpush.msra.mxu0 %v551
    %606 = vmatpush.msra.mxu0 %v550
    %607 = vmatpush.msra.mxu0 %v549
    %608 = vmatpush.msra.mxu0 %v548
    %609 = vmatpush.msra.mxu0 %v547
    %610 = vmatpush.msra.mxu0 %v546
    %611 = vmatpush.msra.mxu0 %v545
    %612 = vmatpush.msra.mxu0 %v544
    %613 = vmatpush.msra.mxu0 %v543
    %614 = vmatpush.msra.mxu0 %v542
    %615 = vmatpush.msra.mxu0 %v541
    %616 = vmatpush.msra.mxu0 %v540
    %617 = vmatpush.msra.mxu0 %v539
    %618 = vmatpush.msra.mxu0 %v538
    %619 = vmatmul.f32.gmra.mxu0 %v600
    %v620 = vpop.f32.mrf.mxu0
    %v621 = vadd.f32 0.0, %v620
    %622 = vdwg.mxu0
    %v623 = vadd.f32 %v602, %v621
    %v624 = vtanh.pop %v623
    %625 = vst [vmem:[%s303] sm:$0xff] %v624
    %v626 = vld [vmem:[%s328] sm:$0xff]
    %627 = vmatpush.msra.mxu0 %v553
    %628 = vmatpush.msra.mxu0 %v552
    %629 = vmatpush.msra.mxu0 %v551
    %630 = vmatpush.msra.mxu0 %v550
    %631 = vmatpush.msra.mxu0 %v549
    %632 = vmatpush.msra.mxu0 %v548
    %633 = vmatpush.msra.mxu0 %v547
    %634 = vmatpush.msra.mxu0 %v546
    %635 = vmatpush.msra.mxu0 %v545
    %636 = vmatpush.msra.mxu0 %v544
    %637 = vmatpush.msra.mxu0 %v543
    %638 = vmatpush.msra.mxu0 %v542
    %639 = vmatpush.msra.mxu0 %v541
    %640 = vmatpush.msra.mxu0 %v540
    %641 = vmatpush.msra.mxu0 %v539
    %642 = vmatpush.msra.mxu0 %v538
    %643 = vmatmul.f32.gmra.mxu0 %v624
    %v644 = vpop.f32.mrf.mxu0
    %v645 = vadd.f32 0.0, %v644
    %646 = vdwg.mxu0
    %v647 = vadd.f32 %v626, %v645
    %v648 = vtanh.pop %v647
    %649 = vst [vmem:[%s328] sm:$0xff] %v648
    %v650 = vld [vmem:[%s353] sm:$0xff]
    %651 = vmatpush.msra.mxu0 %v553
    %652 = vmatpush.msra.mxu0 %v552
    %653 = vmatpush.msra.mxu0 %v551
    %654 = vmatpush.msra.mxu0 %v550
    %655 = vmatpush.msra.mxu0 %v549
    %656 = vmatpush.msra.mxu0 %v548
    %657 = vmatpush.msra.mxu0 %v547
    %658 = vmatpush.msra.mxu0 %v546
    %659 = vmatpush.msra.mxu0 %v545
    %660 = vmatpush.msra.mxu0 %v544
    %661 = vmatpush.msra.mxu0 %v543
    %662 = vmatpush.msra.mxu0 %v542
    %663 = vmatpush.msra.mxu0 %v541
    %664 = vmatpush.msra.mxu0 %v540
    %665 = vmatpush.msra.mxu0 %v539
    %666 = vmatpush.msra.mxu0 %v538
    %667 = vmatmul.f32.gmra.mxu0 %v648
    %v668 = vpop.f32.mrf.mxu0
    %v669 = vadd.f32 0.0, %v668
    %670 = vdwg.mxu0
    %v671 = vadd.f32 %v650, %v669
    %v672 = vtanh.pop %v671
    %673 = vst [vmem:[%s353] sm:$0xff] %v672
    %v674 = vld [vmem:[%s378] sm:$0xff]
    %675 = vmatpush.msra.mxu0 %v553
    %676 = vmatpush.msra.mxu0 %v552
    %677 = vmatpush.msra.mxu0 %v551
    %678 = vmatpush.msra.mxu0 %v550
    %679 = vmatpush.msra.mxu0 %v549
    %680 = vmatpush.msra.mxu0 %v548
    %681 = vmatpush.msra.mxu0 %v547
    %682 = vmatpush.msra.mxu0 %v546
    %683 = vmatpush.msra.mxu0 %v545
    %684 = vmatpush.msra.mxu0 %v544
    %685 = vmatpush.msra.mxu0 %v543
    %686 = vmatpush.msra.mxu0 %v542
    %687 = vmatpush.msra.mxu0 %v541
    %688 = vmatpush.msra.mxu0 %v540
    %689 = vmatpush.msra.mxu0 %v539
    %690 = vmatpush.msra.mxu0 %v538
    %691 = vmatmul.f32.gmra.mxu0 %v672
    %v692 = vpop.f32.mrf.mxu0
    %v693 = vadd.f32 0.0, %v692
    %694 = vdwg.mxu0
    %v695 = vadd.f32 %v674, %v693
    %v696 = vtanh.pop %v695
    %697 = vst [vmem:[%s378] sm:$0xff] %v696
    %v698 = vld [vmem:[%s403] sm:$0xff]
    %699 = vmatpush.msra.mxu0 %v553
    %700 = vmatpush.msra.mxu0 %v552
    %701 = vmatpush.msra.mxu0 %v551
    %702 = vmatpush.msra.mxu0 %v550
    %703 = vmatpush.msra.mxu0 %v549
    %704 = vmatpush.msra.mxu0 %v548
    %705 = vmatpush.msra.mxu0 %v547
    %706 = vmatpush.msra.mxu0 %v546
    %707 = vmatpush.msra.mxu0 %v545
    %708 = vmatpush.msra.mxu0 %v544
    %709 = vmatpush.msra.mxu0 %v543
    %710 = vmatpush.msra.mxu0 %v542
    %711 = vmatpush.msra.mxu0 %v541
    %712 = vmatpush.msra.mxu0 %v540
    %713 = vmatpush.msra.mxu0 %v539
    %714 = vmatpush.msra.mxu0 %v538
    %715 = vmatmul.f32.gmra.mxu0 %v696
    %v716 = vpop.f32.mrf.mxu0
    %v717 = vadd.f32 0.0, %v716
    %718 = vdwg.mxu0
    %v719 = vadd.f32 %v698, %v717
    %v720 = vtanh.pop %v719
    %721 = vst [vmem:[%s403] sm:$0xff] %v720
    %v722 = vld [vmem:[%s428] sm:$0xff]
    %723 = vmatpush.msra.mxu0 %v553
    %724 = vmatpush.msra.mxu0 %v552
    %725 = vmatpush.msra.mxu0 %v551
    %726 = vmatpush.msra.mxu0 %v550
    %727 = vmatpush.msra.mxu0 %v549
    %728 = vmatpush.msra.mxu0 %v548
    %729 = vmatpush.msra.mxu0 %v547
    %730 = vmatpush.msra.mxu0 %v546
    %731 = vmatpush.msra.mxu0 %v545
    %732 = vmatpush.msra.mxu0 %v544
    %733 = vmatpush.msra.mxu0 %v543
    %734 = vmatpush.msra.mxu0 %v542
    %735 = vmatpush.msra.mxu0 %v541
    %736 = vmatpush.msra.mxu0 %v540
    %737 = vmatpush.msra.mxu0 %v539
    %738 = vmatpush.msra.mxu0 %v538
    %739 = vmatmul.f32.gmra.mxu0 %v720
    %v740 = vpop.f32.mrf.mxu0
    %v741 = vadd.f32 0.0, %v740
    %742 = vdwg.mxu0
    %v743 = vadd.f32 %v722, %v741
    %v744 = vtanh.pop %v743
    %745 = vst [vmem:[%s428] sm:$0xff] %v744
    %v746 = vld [vmem:[#allocation14] sm:$0xff]
    %v747 = vld [vmem:[#allocation14 + $0x8] sm:$0xff]
    %v748 = vld [vmem:[#allocation14 + $0x10] sm:$0xff]
    %v749 = vld [vmem:[#allocation14 + $0x18] sm:$0xff]
    %v750 = vld [vmem:[#allocation14 + $0x20] sm:$0xff]
    %v751 = vld [vmem:[#allocation14 + $0x28] sm:$0xff]
    %v752 = vld [vmem:[#allocation14 + $0x30] sm:$0xff]
    %v753 = vld [vmem:[#allocation14 + $0x38] sm:$0xff]
    %v754 = vld [vmem:[#allocation14 + $0x40] sm:$0xff]
    %v755 = vld [vmem:[#allocation14 + $0x48] sm:$0xff]
    %v756 = vld [vmem:[#allocation14 + $0x50] sm:$0xff]
    %v757 = vld [vmem:[#allocation14 + $0x58] sm:$0xff]
    %v758 = vld [vmem:[#allocation14 + $0x60] sm:$0xff]
    %v759 = vld [vmem:[#allocation14 + $0x68] sm:$0xff]
    %v760 = vld [vmem:[#allocation14 + $0x70] sm:$0xff]
    %v761 = vld [vmem:[#allocation14 + $0x78] sm:$0xff]
    %v762 = vld [vmem:[%s8] sm:$0x1]
    %v764 = vperm.slane %v762, 0
    %766 = vmatpush.msra.mxu0 %v761
    %767 = vmatpush.msra.mxu0 %v760
    %768 = vmatpush.msra.mxu0 %v759
    %769 = vmatpush.msra.mxu0 %v758
    %770 = vmatpush.msra.mxu0 %v757
    %771 = vmatpush.msra.mxu0 %v756
    %772 = vmatpush.msra.mxu0 %v755
    %773 = vmatpush.msra.mxu0 %v754
    %774 = vmatpush.msra.mxu0 %v753
    %775 = vmatpush.msra.mxu0 %v752
    %776 = vmatpush.msra.mxu0 %v751
    %777 = vmatpush.msra.mxu0 %v750
    %778 = vmatpush.msra.mxu0 %v749
    %779 = vmatpush.msra.mxu0 %v748
    %780 = vmatpush.msra.mxu0 %v747
    %781 = vmatpush.msra.mxu0 %v746
    %782 = vmatmul.f32.gmra.mxu0 %v744
    %v783 = vpop.f32.mrf.mxu0
    %v784 = vadd.f32 %v764, %v783
    %785 = vdwg.mxu0
    %786 = vst [vmem:[#allocation15] sm:$0xff] %v784
    // Predicated region
    $region66: #{tpu_custom_call.1} parent=1 // pred_check
      _
    $region67: #{tpu_custom_call.1} parent=1 // pred_check_branch
      %788 = sbr.rel (0) target = $region69
    $region68: #{tpu_custom_call.1} parent=1 // pred_region
      %790 = vsyncadd [#allocation5], 0
      %s792 = sshll.u32 [#allocation15], 4
      %s793 = int_to_ptr.vmem [resolvable:$true] %s792
      %s794 = sshll.u32 %s9, 4
      %s795 = int_to_ptr.hbm [resolvable:$true] %s794
      %797 = dma.vmem_to_hbm [thread:$0]  %s793, 128, %s795, [#allocation5]
    $region69: #{tpu_custom_call.1} parent=1 // pred_fallthru
      _
    // Predicated region
    $region70: #{tpu_custom_call.1} parent=1 // pred_check
      _
    $region71: #{tpu_custom_call.1} parent=1 // pred_check_branch
      %799 = sbr.rel (0) target = $region73
    $region72: #{tpu_custom_call.1} parent=1 // pred_region
      %801 = dma.done [#allocation5], 128
    $region73: #{tpu_custom_call.1} parent=1 // pred_fallthru
      _
    %802 = vsyncpa [#allocation4], 1
    %803 = vsyncpa [#allocation7], 1
    %804 = vsyncpa [#allocation10], 1
    %805 = vsyncpa [#allocation13], 1
    %806 = vsyncpa [#allocation5], 1

</llo_original>
